<compile_context>
chip_gen: v6e
topology: v6e:2x2x1
jax: 0.10.0
libtpu: 0.0.40
codegen_flags: <defaults>
</compile_context>

<pallas_src>
import jax
import jax.numpy as jnp
from jax.experimental import pallas as pl
from jax.experimental.pallas import tpu as pltpu


# ----------------------------------------------------------------------------------
# Kernel
# ----------------------------------------------------------------------------------
def lstm_fc_kernel(x_ref,        # ((T+1)*TB, D)   bf16, time-major rows (t*TB + b)
                   wx_ref,       # (D, 8H)         bf16, layer-0 input proj (interleaved)
                   bx_ref,       # (1, 8H)         f32,  combined biases   (interleaved)
                   wf_ref,       # (2H, 8H)        bf16, fused recurrent weights
                   wfc_ref,      # (H, Kpad)       bf16
                   bfc_ref,      # (1, Kpad)       f32
                   out_ref,      # (TB, Kpad)      f32
                   xproj_ref):   # scratch ((T+1)*TB, 8H) f32
    TB = out_ref.shape[0]
    Tp1 = x_ref.shape[0] // TB
    T = Tp1 - 1
    H2 = wf_ref.shape[0]          # 2H
    H = H2 // 2

    # ---- hoisted input projection (+ bias fold) for ALL T+1 timesteps, off the chain ----
    xproj_ref[...] = (
        jnp.dot(x_ref[...], wx_ref[...], preferred_element_type=jnp.float32)
        + bx_ref[...])

    def gates(gp):
        # One full-width sigmoid over (TB, 8H); tanh of the g-gate recovered as
        # 2*sigmoid(2z) - 1 (g columns were pre-scaled by 2 in the wrapper).
        sg = jax.nn.sigmoid(gp)
        i = sg[:, 0 * H2:1 * H2]
        f = sg[:, 1 * H2:2 * H2]
        g = 2.0 * sg[:, 2 * H2:3 * H2] - 1.0
        o = sg[:, 3 * H2:4 * H2]
        return i, f, g, o

    # ---- prologue (wavefront step "-1"): all states are zero, so the fused matmul is
    #      zero and only the layer-0 / step-0 half of the update is real; mask the rest.
    col = jax.lax.broadcasted_iota(jnp.int32, (TB, H2), 1)
    layer0_mask = col < H
    i0, f0, g0, o0 = gates(xproj_ref[pl.ds(0, TB), :])
    c_cat = jnp.where(layer0_mask, i0 * g0, 0.0)      # [c0_0 | 0]
    h_cat = o0 * jnp.tanh(c_cat)                       # second half exactly 0

    wf = wf_ref[...]

    # ---- wavefront recurrence: iteration t fuses (layer-0, step t+1) and (layer-1, step t)
    #      into ONE matmul + ONE sigmoid + ONE tanh on the serial chain.
    def body(t, carry):
        c_cat, h_cat = carry
        fused = jnp.dot(h_cat.astype(jnp.bfloat16), wf,
                        preferred_element_type=jnp.float32)
        off = pl.multiple_of((t + 1) * TB, TB)
        gp = fused + xproj_ref[pl.ds(off, TB), :]
        i, f, g, o = gates(gp)
        c_cat = f * c_cat + i * g
        h_cat = o * jnp.tanh(c_cat)
        return c_cat, h_cat

    c_cat, h_cat = jax.lax.fori_loop(0, T, body, (c_cat, h_cat), unroll=True)

    # ---- fc(out[:, -1, :]) == fc(h1 at last real step); lane-dense (Kpad) store ----
    h1 = h_cat[:, H:H2]
    out_ref[...] = (jnp.dot(h1.astype(jnp.bfloat16), wfc_ref[...],
                            preferred_element_type=jnp.float32) + bfc_ref[...])


# ----------------------------------------------------------------------------------
# Wrapper
# ----------------------------------------------------------------------------------
def _round_up(v, m):
    return ((v + m - 1) // m) * m


def _choose_batch_tile(B, T, H, max_tile=256, scratch_budget=8 << 20):
    """Batch rows per grid step; VMEM-capped (xproj scratch = (T+1)*TB*8H*4 bytes)."""
    tb = min(max_tile, _round_up(B, 8))
    tb = max(8, (tb // 8) * 8)
    per_row_bytes = (T + 1) * 8 * H * 4
    while tb > 8 and tb * per_row_bytes > scratch_budget:
        tb = max(8, ((tb // 2) // 8) * 8)
    return tb


def _gate_split(w, H):
    # last-dim 4H in PyTorch gate order [i | f | g | o] -> four (..., H) blocks
    return [w[..., k * H:(k + 1) * H] for k in range(4)]


def _build_fused_params(params, K_pad):
    (wih0, whh0, b0, wih1, whh1, b1, wfc, bfc) = params
    D = wih0.shape[0]
    H = whh0.shape[0]
    zD = jnp.zeros((D, H), jnp.float32)
    zH = jnp.zeros((H, H), jnp.float32)

    i_x, f_x, g_x, o_x = _gate_split(wih0, H)
    i_h0, f_h0, g_h0, o_h0 = _gate_split(whh0, H)
    i_i1, f_i1, g_i1, o_i1 = _gate_split(wih1, H)
    i_h1, f_h1, g_h1, o_h1 = _gate_split(whh1, H)
    i_b0, f_b0, g_b0, o_b0 = _gate_split(b0, H)
    i_b1, f_b1, g_b1, o_b1 = _gate_split(b1, H)

    # Interleaved 8H column layout: [i0 i1 | f0 f1 | g0 g1 | o0 o1].
    # g-gate columns pre-scaled by 2 so the kernel can use tanh(z) = 2*sigmoid(2z) - 1.
    w_x = jnp.concatenate(
        [i_x, zD, f_x, zD, 2.0 * g_x, zD, o_x, zD], axis=1)                     # (D, 8H)
    b_x = jnp.concatenate(
        [i_b0, i_b1, f_b0, f_b1, 2.0 * g_b0, 2.0 * g_b1, o_b0, o_b1], axis=1)   # (1, 8H)
    w_top = jnp.concatenate(
        [i_h0, i_i1, f_h0, f_i1, 2.0 * g_h0, 2.0 * g_i1, o_h0, o_i1], axis=1)   # (H, 8H)
    w_bot = jnp.concatenate(
        [zH, i_h1, zH, f_h1, zH, 2.0 * g_h1, zH, o_h1], axis=1)                 # (H, 8H)
    w_fused = jnp.concatenate([w_top, w_bot], axis=0)                           # (2H, 8H)

    K = wfc.shape[1]
    wfc_p = jnp.pad(wfc, ((0, 0), (0, K_pad - K)))
    bfc_p = jnp.pad(bfc, ((0, 0), (0, K_pad - K)))
    return (w_x.astype(jnp.bfloat16), b_x,
            w_fused.astype(jnp.bfloat16),
            wfc_p.astype(jnp.bfloat16), bfc_p)


def lstm_fc_forward(x, params, *, max_batch_tile=256):
    """x: (B, T, D) f32 (batch_first, like PyTorch). params are transposed vs PyTorch:
    wih0 (D,4H), whh0 (H,4H), b0=(b_ih0+b_hh0) (1,4H), wih1/whh1 (H,4H), b1 (1,4H),
    wfc (H,K), bfc (1,K). Returns (B, K) f32 logits."""
    (wih0, whh0, b0, wih1, whh1, b1, wfc, bfc) = params
    B, T, D = x.shape
    H = whh0.shape[0]
    K = wfc.shape[1]
    K_pad = max(128, _round_up(K, 128))

    TB = _choose_batch_tile(B, T, H, max_batch_tile)
    B_pad = _round_up(B, TB)
    n_tiles = B_pad // TB

    # Time-major, one zero-padded trailing timestep (the wavefront epilogue reads row T),
    # batch padded to a multiple of TB, then laid out per batch tile as one 2D slab
    # ((T+1)*TB, D) so every per-step access in the kernel is a plain pl.ds load.
    xT = jnp.transpose(x, (1, 0, 2))                                   # (T, B, D)
    xT = jnp.pad(xT, ((0, 1), (0, B_pad - B), (0, 0)))                 # (T+1, B_pad, D)
    x_tiles = xT.reshape(T + 1, n_tiles, TB, D).transpose(1, 0, 2, 3)
    x_tiles = x_tiles.reshape(n_tiles, (T + 1) * TB, D).astype(jnp.bfloat16)

    w_x, b_x, w_fused, wfc_p, bfc_p = _build_fused_params(params, K_pad)

    out = pl.pallas_call(
        lstm_fc_kernel,
        out_shape=jax.ShapeDtypeStruct((B_pad, K_pad), jnp.float32),
        grid_spec=pltpu.PrefetchScalarGridSpec(
            num_scalar_prefetch=0,
            grid=(n_tiles,),
            in_specs=[
                pl.BlockSpec((None, (T + 1) * TB, D), lambda b: (b, 0, 0)),  # x slab
                pl.BlockSpec((D, 8 * H), lambda b: (0, 0)),                  # w_x
                pl.BlockSpec((1, 8 * H), lambda b: (0, 0)),                  # b_x
                pl.BlockSpec((2 * H, 8 * H), lambda b: (0, 0)),              # fused W
                pl.BlockSpec((H, K_pad), lambda b: (0, 0)),                  # fc W
                pl.BlockSpec((1, K_pad), lambda b: (0, 0)),                  # fc b
            ],
            out_specs=pl.BlockSpec((TB, K_pad), lambda b: (b, 0)),
            scratch_shapes=[pltpu.VMEM(((T + 1) * TB, 8 * H), jnp.float32)],
        ),
        compiler_params=pltpu.CompilerParams(
            dimension_semantics=("parallel",),
            vmem_limit_bytes=32 * 1024 * 1024),
    )(x_tiles, w_x, b_x, w_fused, wfc_p, bfc_p)

    return out[:B, :K]


# ----------------------------------------------------------------------------------
# Pure-JAX reference with the same mixed-precision policy (bf16 matmuls, f32 gates)
# ----------------------------------------------------------------------------------
def _ref_forward(x, params):
    (wih0, whh0, b0, wih1, whh1, b1, wfc, bfc) = params
    B, T, D = x.shape
    H = whh0.shape[0]
    xb = x.astype(jnp.bfloat16)
    wih0b, whh0b = wih0.astype(jnp.bfloat16), whh0.astype(jnp.bfloat16)
    wih1b, whh1b = wih1.astype(jnp.bfloat16), whh1.astype(jnp.bfloat16)
    wfcb = wfc.astype(jnp.bfloat16)

    def act(g4):
        i = jax.nn.sigmoid(g4[:, 0 * H:1 * H])
        f = jax.nn.sigmoid(g4[:, 1 * H:2 * H])
        g = jnp.tanh(g4[:, 2 * H:3 * H])
        o = jax.nn.sigmoid(g4[:, 3 * H:4 * H])
        return i, f, g, o

    h0 = jnp.zeros((B, H), jnp.float32); c0 = jnp.zeros((B, H), jnp.float32)
    h1 = jnp.zeros((B, H), jnp.float32); c1 = jnp.zeros((B, H), jnp.float32)
    for t in range(T):
        g0 = (jnp.dot(xb[:, t, :], wih0b, preferred_element_type=jnp.float32) + b0
              + jnp.dot(h0.astype(jnp.bfloat16), whh0b, preferred_element_type=jnp.float32))
        i, f, g, o = act(g0)
        c0 = f * c0 + i * g
        h0 = o * jnp.tanh(c0)

        g1 = (jnp.dot(h0.astype(jnp.bfloat16), wih1b, preferred_element_type=jnp.float32)
              + jnp.dot(h1.astype(jnp.bfloat16), whh1b, preferred_element_type=jnp.float32)
              + b1)
        i, f, g, o = act(g1)
        c1 = f * c1 + i * g
        h1 = o * jnp.tanh(c1)

    return jnp.dot(h1.astype(jnp.bfloat16), wfcb, preferred_element_type=jnp.float32) + bfc


# ----------------------------------------------------------------------------------
if __name__ == "__main__":
    # Small shapes consistent with the module's forward (num_layers = 2).
    batch, seq_len = 4, 8
    input_size, hidden_size, num_keys = 4, 32, 16

    key = jax.random.PRNGKey(0)
    ks = jax.random.split(key, 12)
    bound = 1.0 / jnp.sqrt(hidden_size)

    def u(k, shape):
        return jax.random.uniform(k, shape, jnp.float32, -bound, bound)

    # PyTorch stores W_ih as (4H, in); we store transposed (in, 4H). Biases combined.
    wih0 = u(ks[0], (input_size, 4 * hidden_size))
    whh0 = u(ks[1], (hidden_size, 4 * hidden_size))
    b0 = u(ks[2], (1, 4 * hidden_size)) + u(ks[3], (1, 4 * hidden_size))
    wih1 = u(ks[4], (hidden_size, 4 * hidden_size))
    whh1 = u(ks[5], (hidden_size, 4 * hidden_size))
    b1 = u(ks[6], (1, 4 * hidden_size)) + u(ks[7], (1, 4 * hidden_size))
    wfc = u(ks[8], (hidden_size, num_keys))
    bfc = u(ks[9], (1, num_keys))

    params = (wih0, whh0, b0, wih1, whh1, b1, wfc, bfc)
    x = jax.random.normal(ks[10], (batch, seq_len, input_size), jnp.float32)

    out = lstm_fc_forward(x, params)
    out = jax.block_until_ready(out)

    ref = _ref_forward(x, params)
    assert out.shape == (batch, num_keys)
    assert jnp.allclose(out, ref, atol=3e-3, rtol=2e-2), "mismatch vs pure-JAX reference"

    print("KERNEL_OK")
</pallas_src>

<mosaic_0001>
module attributes {stable_mosaic.version = 11 : i64} {
  func.func @lstm_fc_kernel(%arg0: i32, %arg1: memref<1x72x4xbf16, #tpu.memory_space<vmem>>, %arg2: memref<4x256xbf16, #tpu.memory_space<vmem>>, %arg3: memref<1x256xf32, #tpu.memory_space<vmem>>, %arg4: memref<64x256xbf16, #tpu.memory_space<vmem>>, %arg5: memref<32x128xbf16, #tpu.memory_space<vmem>>, %arg6: memref<1x128xf32, #tpu.memory_space<vmem>>, %arg7: memref<8x128xf32, #tpu.memory_space<vmem>>, %arg8: memref<72x256xf32, #tpu.memory_space<vmem>>) attributes {dimension_semantics = [#tpu.dimension_semantics<parallel>], iteration_bounds = array<i64: 1>, scalar_prefetch = 0 : i64, scratch_operands = 1 : i64, tpu.core_type = #tpu.core_type<tc>, window_params = [{transform_indices = @transform_0, window_bounds = array<i64: 1, 72, 4>}, {pipeline_mode = #tpu.pipeline_mode<synchronous>, transform_indices = @transform_1, window_bounds = array<i64: 4, 256>}, {pipeline_mode = #tpu.pipeline_mode<synchronous>, transform_indices = @transform_2, window_bounds = array<i64: 1, 256>}, {pipeline_mode = #tpu.pipeline_mode<synchronous>, transform_indices = @transform_3, window_bounds = array<i64: 64, 256>}, {pipeline_mode = #tpu.pipeline_mode<synchronous>, transform_indices = @transform_4, window_bounds = array<i64: 32, 128>}, {pipeline_mode = #tpu.pipeline_mode<synchronous>, transform_indices = @transform_5, window_bounds = array<i64: 1, 128>}, {transform_indices = @transform_6, window_bounds = array<i64: 8, 128>}]} {
    %c0 = arith.constant 0 : index
    %c0_0 = arith.constant 0 : index
    %c0_1 = arith.constant 0 : index
    %0 = vector.load %arg1[%c0, %c0_0, %c0_1] : memref<1x72x4xbf16, #tpu.memory_space<vmem>>, vector<1x72x4xbf16>
    %1 = vector.shape_cast %0 : vector<1x72x4xbf16> to vector<72x4xbf16>
    %c0_2 = arith.constant 0 : index
    %c0_3 = arith.constant 0 : index
    %2 = vector.load %arg2[%c0_2, %c0_3] : memref<4x256xbf16, #tpu.memory_space<vmem>>, vector<4x256xbf16>
    %cst = arith.constant dense<0.000000e+00> : vector<72x256xf32>
    %3 = tpu.matmul %1, %2, %cst {dimension_numbers = #tpu.dot_dimension_numbers<[1], [0], [0], [1], [0, 0, 1, 1], [], []>} : vector<72x4xbf16>, vector<4x256xbf16>, vector<72x256xf32> -> vector<72x256xf32>
    %c0_4 = arith.constant 0 : index
    %c0_5 = arith.constant 0 : index
    %4 = vector.load %arg3[%c0_4, %c0_5] : memref<1x256xf32, #tpu.memory_space<vmem>>, vector<1x256xf32>
    %5 = vector.broadcast %4 : vector<1x256xf32> to vector<72x256xf32>
    %6 = arith.addf %3, %5 : vector<72x256xf32>
    %c0_6 = arith.constant 0 : index
    %c0_7 = arith.constant 0 : index
    %7 = vector.load %arg8[%c0_6, %c0_7] : memref<72x256xf32, #tpu.memory_space<vmem>>, vector<72x256xf32>
    tpu.vector_store %arg8[%c0_6, %c0_7], %6 {strides = array<i32>} : memref<72x256xf32, #tpu.memory_space<vmem>>, vector<72x256xf32>,
    %8 = tpu.iota {dimensions = array<i32: 1>} : vector<8x64xi32>
    %c32_i32 = arith.constant 32 : i32
    %9 = vector.broadcast %c32_i32 : i32 to vector<8x64xi32>
    %10 = arith.cmpi slt, %8, %9 : vector<8x64xi32>
    %c0_8 = arith.constant 0 : index
    %c0_9 = arith.constant 0 : index
    %11 = vector.load %arg8[%c0_8, %c0_9] : memref<72x256xf32, #tpu.memory_space<vmem>>, vector<8x256xf32>
    %12 = arith.negf %11 : vector<8x256xf32>
    %13 = math.exp %12 : vector<8x256xf32>
    %cst_10 = arith.constant 1.000000e+00 : f32
    %14 = vector.broadcast %cst_10 : f32 to vector<8x256xf32>
    %15 = arith.addf %14, %13 : vector<8x256xf32>
    %16 = arith.divf %14, %15 : vector<8x256xf32>
    %17 = vector.extract_strided_slice %16 {offsets = [0, 0], sizes = [8, 64], strides = [1, 1]} : vector<8x256xf32> to vector<8x64xf32>
    %18 = vector.extract_strided_slice %16 {offsets = [0, 128], sizes = [8, 64], strides = [1, 1]} : vector<8x256xf32> to vector<8x64xf32>
    %cst_11 = arith.constant 2.000000e+00 : f32
    %19 = vector.broadcast %cst_11 : f32 to vector<8x64xf32>
    %20 = arith.mulf %19, %18 : vector<8x64xf32>
    %cst_12 = arith.constant 1.000000e+00 : f32
    %21 = vector.broadcast %cst_12 : f32 to vector<8x64xf32>
    %22 = arith.subf %20, %21 : vector<8x64xf32>
    %23 = vector.extract_strided_slice %16 {offsets = [0, 192], sizes = [8, 64], strides = [1, 1]} : vector<8x256xf32> to vector<8x64xf32>
    %24 = arith.mulf %17, %22 : vector<8x64xf32>
    %cst_13 = arith.constant 0.000000e+00 : f32
    %25 = vector.broadcast %cst_13 : f32 to vector<8x64xf32>
    %26 = arith.select %10, %24, %25 : vector<8x64xi1>, vector<8x64xf32>
    %27 = math.tanh %26 : vector<8x64xf32>
    %28 = arith.mulf %23, %27 : vector<8x64xf32>
    %c0_14 = arith.constant 0 : index
    %c0_15 = arith.constant 0 : index
    %29 = vector.load %arg4[%c0_14, %c0_15] : memref<64x256xbf16, #tpu.memory_space<vmem>>, vector<64x256xbf16>
    %c0_i32 = arith.constant 0 : i32
    %30 = arith.truncf %28 : vector<8x64xf32> to vector<8x64xbf16>
    %cst_16 = arith.constant dense<0.000000e+00> : vector<8x256xf32>
    %31 = tpu.matmul %30, %29, %cst_16 {dimension_numbers = #tpu.dot_dimension_numbers<[1], [0], [0], [1], [0, 0, 1, 1], [], []>} : vector<8x64xbf16>, vector<64x256xbf16>, vector<8x256xf32> -> vector<8x256xf32>
    %c1_i32 = arith.constant 1 : i32
    %32 = arith.addi %c0_i32, %c1_i32 : i32
    %c8_i32 = arith.constant 8 : i32
    %33 = arith.muli %32, %c8_i32 : i32
    %34 = tpu.assume_multiple %33, 8 : i32
    %35 = arith.index_cast %34 : i32 to index
    %c0_17 = arith.constant 0 : index
    %36 = vector.load %arg8[%35, %c0_17] : memref<72x256xf32, #tpu.memory_space<vmem>>, vector<8x256xf32>
    %37 = arith.addf %31, %36 : vector<8x256xf32>
    %38 = arith.negf %37 : vector<8x256xf32>
    %39 = math.exp %38 : vector<8x256xf32>
    %cst_18 = arith.constant 1.000000e+00 : f32
    %40 = vector.broadcast %cst_18 : f32 to vector<8x256xf32>
    %41 = arith.addf %40, %39 : vector<8x256xf32>
    %42 = arith.divf %40, %41 : vector<8x256xf32>
    %43 = vector.extract_strided_slice %42 {offsets = [0, 0], sizes = [8, 64], strides = [1, 1]} : vector<8x256xf32> to vector<8x64xf32>
    %44 = vector.extract_strided_slice %42 {offsets = [0, 64], sizes = [8, 64], strides = [1, 1]} : vector<8x256xf32> to vector<8x64xf32>
    %45 = vector.extract_strided_slice %42 {offsets = [0, 128], sizes = [8, 64], strides = [1, 1]} : vector<8x256xf32> to vector<8x64xf32>
    %cst_19 = arith.constant 2.000000e+00 : f32
    %46 = vector.broadcast %cst_19 : f32 to vector<8x64xf32>
    %47 = arith.mulf %46, %45 : vector<8x64xf32>
    %cst_20 = arith.constant 1.000000e+00 : f32
    %48 = vector.broadcast %cst_20 : f32 to vector<8x64xf32>
    %49 = arith.subf %47, %48 : vector<8x64xf32>
    %50 = vector.extract_strided_slice %42 {offsets = [0, 192], sizes = [8, 64], strides = [1, 1]} : vector<8x256xf32> to vector<8x64xf32>
    %51 = arith.mulf %44, %26 : vector<8x64xf32>
    %52 = arith.mulf %43, %49 : vector<8x64xf32>
    %53 = arith.addf %51, %52 : vector<8x64xf32>
    %54 = math.tanh %53 : vector<8x64xf32>
    %55 = arith.mulf %50, %54 : vector<8x64xf32>
    %c1_i32_21 = arith.constant 1 : i32
    %56 = arith.truncf %55 : vector<8x64xf32> to vector<8x64xbf16>
    %cst_22 = arith.constant dense<0.000000e+00> : vector<8x256xf32>
    %57 = tpu.matmul %56, %29, %cst_22 {dimension_numbers = #tpu.dot_dimension_numbers<[1], [0], [0], [1], [0, 0, 1, 1], [], []>} : vector<8x64xbf16>, vector<64x256xbf16>, vector<8x256xf32> -> vector<8x256xf32>
    %c1_i32_23 = arith.constant 1 : i32
    %58 = arith.addi %c1_i32_21, %c1_i32_23 : i32
    %c8_i32_24 = arith.constant 8 : i32
    %59 = arith.muli %58, %c8_i32_24 : i32
    %60 = tpu.assume_multiple %59, 8 : i32
    %61 = arith.index_cast %60 : i32 to index
    %c0_25 = arith.constant 0 : index
    %62 = vector.load %arg8[%61, %c0_25] : memref<72x256xf32, #tpu.memory_space<vmem>>, vector<8x256xf32>
    %63 = arith.addf %57, %62 : vector<8x256xf32>
    %64 = arith.negf %63 : vector<8x256xf32>
    %65 = math.exp %64 : vector<8x256xf32>
    %cst_26 = arith.constant 1.000000e+00 : f32
    %66 = vector.broadcast %cst_26 : f32 to vector<8x256xf32>
    %67 = arith.addf %66, %65 : vector<8x256xf32>
    %68 = arith.divf %66, %67 : vector<8x256xf32>
    %69 = vector.extract_strided_slice %68 {offsets = [0, 0], sizes = [8, 64], strides = [1, 1]} : vector<8x256xf32> to vector<8x64xf32>
    %70 = vector.extract_strided_slice %68 {offsets = [0, 64], sizes = [8, 64], strides = [1, 1]} : vector<8x256xf32> to vector<8x64xf32>
    %71 = vector.extract_strided_slice %68 {offsets = [0, 128], sizes = [8, 64], strides = [1, 1]} : vector<8x256xf32> to vector<8x64xf32>
    %cst_27 = arith.constant 2.000000e+00 : f32
    %72 = vector.broadcast %cst_27 : f32 to vector<8x64xf32>
    %73 = arith.mulf %72, %71 : vector<8x64xf32>
    %cst_28 = arith.constant 1.000000e+00 : f32
    %74 = vector.broadcast %cst_28 : f32 to vector<8x64xf32>
    %75 = arith.subf %73, %74 : vector<8x64xf32>
    %76 = vector.extract_strided_slice %68 {offsets = [0, 192], sizes = [8, 64], strides = [1, 1]} : vector<8x256xf32> to vector<8x64xf32>
    %77 = arith.mulf %70, %53 : vector<8x64xf32>
    %78 = arith.mulf %69, %75 : vector<8x64xf32>
    %79 = arith.addf %77, %78 : vector<8x64xf32>
    %80 = math.tanh %79 : vector<8x64xf32>
    %81 = arith.mulf %76, %80 : vector<8x64xf32>
    %c2_i32 = arith.constant 2 : i32
    %82 = arith.truncf %81 : vector<8x64xf32> to vector<8x64xbf16>
    %cst_29 = arith.constant dense<0.000000e+00> : vector<8x256xf32>
    %83 = tpu.matmul %82, %29, %cst_29 {dimension_numbers = #tpu.dot_dimension_numbers<[1], [0], [0], [1], [0, 0, 1, 1], [], []>} : vector<8x64xbf16>, vector<64x256xbf16>, vector<8x256xf32> -> vector<8x256xf32>
    %c1_i32_30 = arith.constant 1 : i32
    %84 = arith.addi %c2_i32, %c1_i32_30 : i32
    %c8_i32_31 = arith.constant 8 : i32
    %85 = arith.muli %84, %c8_i32_31 : i32
    %86 = tpu.assume_multiple %85, 8 : i32
    %87 = arith.index_cast %86 : i32 to index
    %c0_32 = arith.constant 0 : index
    %88 = vector.load %arg8[%87, %c0_32] : memref<72x256xf32, #tpu.memory_space<vmem>>, vector<8x256xf32>
    %89 = arith.addf %83, %88 : vector<8x256xf32>
    %90 = arith.negf %89 : vector<8x256xf32>
    %91 = math.exp %90 : vector<8x256xf32>
    %cst_33 = arith.constant 1.000000e+00 : f32
    %92 = vector.broadcast %cst_33 : f32 to vector<8x256xf32>
    %93 = arith.addf %92, %91 : vector<8x256xf32>
    %94 = arith.divf %92, %93 : vector<8x256xf32>
    %95 = vector.extract_strided_slice %94 {offsets = [0, 0], sizes = [8, 64], strides = [1, 1]} : vector<8x256xf32> to vector<8x64xf32>
    %96 = vector.extract_strided_slice %94 {offsets = [0, 64], sizes = [8, 64], strides = [1, 1]} : vector<8x256xf32> to vector<8x64xf32>
    %97 = vector.extract_strided_slice %94 {offsets = [0, 128], sizes = [8, 64], strides = [1, 1]} : vector<8x256xf32> to vector<8x64xf32>
    %cst_34 = arith.constant 2.000000e+00 : f32
    %98 = vector.broadcast %cst_34 : f32 to vector<8x64xf32>
    %99 = arith.mulf %98, %97 : vector<8x64xf32>
    %cst_35 = arith.constant 1.000000e+00 : f32
    %100 = vector.broadcast %cst_35 : f32 to vector<8x64xf32>
    %101 = arith.subf %99, %100 : vector<8x64xf32>
    %102 = vector.extract_strided_slice %94 {offsets = [0, 192], sizes = [8, 64], strides = [1, 1]} : vector<8x256xf32> to vector<8x64xf32>
    %103 = arith.mulf %96, %79 : vector<8x64xf32>
    %104 = arith.mulf %95, %101 : vector<8x64xf32>
    %105 = arith.addf %103, %104 : vector<8x64xf32>
    %106 = math.tanh %105 : vector<8x64xf32>
    %107 = arith.mulf %102, %106 : vector<8x64xf32>
    %c3_i32 = arith.constant 3 : i32
    %108 = arith.truncf %107 : vector<8x64xf32> to vector<8x64xbf16>
    %cst_36 = arith.constant dense<0.000000e+00> : vector<8x256xf32>
    %109 = tpu.matmul %108, %29, %cst_36 {dimension_numbers = #tpu.dot_dimension_numbers<[1], [0], [0], [1], [0, 0, 1, 1], [], []>} : vector<8x64xbf16>, vector<64x256xbf16>, vector<8x256xf32> -> vector<8x256xf32>
    %c1_i32_37 = arith.constant 1 : i32
    %110 = arith.addi %c3_i32, %c1_i32_37 : i32
    %c8_i32_38 = arith.constant 8 : i32
    %111 = arith.muli %110, %c8_i32_38 : i32
    %112 = tpu.assume_multiple %111, 8 : i32
    %113 = arith.index_cast %112 : i32 to index
    %c0_39 = arith.constant 0 : index
    %114 = vector.load %arg8[%113, %c0_39] : memref<72x256xf32, #tpu.memory_space<vmem>>, vector<8x256xf32>
    %115 = arith.addf %109, %114 : vector<8x256xf32>
    %116 = arith.negf %115 : vector<8x256xf32>
    %117 = math.exp %116 : vector<8x256xf32>
    %cst_40 = arith.constant 1.000000e+00 : f32
    %118 = vector.broadcast %cst_40 : f32 to vector<8x256xf32>
    %119 = arith.addf %118, %117 : vector<8x256xf32>
    %120 = arith.divf %118, %119 : vector<8x256xf32>
    %121 = vector.extract_strided_slice %120 {offsets = [0, 0], sizes = [8, 64], strides = [1, 1]} : vector<8x256xf32> to vector<8x64xf32>
    %122 = vector.extract_strided_slice %120 {offsets = [0, 64], sizes = [8, 64], strides = [1, 1]} : vector<8x256xf32> to vector<8x64xf32>
    %123 = vector.extract_strided_slice %120 {offsets = [0, 128], sizes = [8, 64], strides = [1, 1]} : vector<8x256xf32> to vector<8x64xf32>
    %cst_41 = arith.constant 2.000000e+00 : f32
    %124 = vector.broadcast %cst_41 : f32 to vector<8x64xf32>
    %125 = arith.mulf %124, %123 : vector<8x64xf32>
    %cst_42 = arith.constant 1.000000e+00 : f32
    %126 = vector.broadcast %cst_42 : f32 to vector<8x64xf32>
    %127 = arith.subf %125, %126 : vector<8x64xf32>
    %128 = vector.extract_strided_slice %120 {offsets = [0, 192], sizes = [8, 64], strides = [1, 1]} : vector<8x256xf32> to vector<8x64xf32>
    %129 = arith.mulf %122, %105 : vector<8x64xf32>
    %130 = arith.mulf %121, %127 : vector<8x64xf32>
    %131 = arith.addf %129, %130 : vector<8x64xf32>
    %132 = math.tanh %131 : vector<8x64xf32>
    %133 = arith.mulf %128, %132 : vector<8x64xf32>
    %c4_i32 = arith.constant 4 : i32
    %134 = arith.truncf %133 : vector<8x64xf32> to vector<8x64xbf16>
    %cst_43 = arith.constant dense<0.000000e+00> : vector<8x256xf32>
    %135 = tpu.matmul %134, %29, %cst_43 {dimension_numbers = #tpu.dot_dimension_numbers<[1], [0], [0], [1], [0, 0, 1, 1], [], []>} : vector<8x64xbf16>, vector<64x256xbf16>, vector<8x256xf32> -> vector<8x256xf32>
    %c1_i32_44 = arith.constant 1 : i32
    %136 = arith.addi %c4_i32, %c1_i32_44 : i32
    %c8_i32_45 = arith.constant 8 : i32
    %137 = arith.muli %136, %c8_i32_45 : i32
    %138 = tpu.assume_multiple %137, 8 : i32
    %139 = arith.index_cast %138 : i32 to index
    %c0_46 = arith.constant 0 : index
    %140 = vector.load %arg8[%139, %c0_46] : memref<72x256xf32, #tpu.memory_space<vmem>>, vector<8x256xf32>
    %141 = arith.addf %135, %140 : vector<8x256xf32>
    %142 = arith.negf %141 : vector<8x256xf32>
    %143 = math.exp %142 : vector<8x256xf32>
    %cst_47 = arith.constant 1.000000e+00 : f32
    %144 = vector.broadcast %cst_47 : f32 to vector<8x256xf32>
    %145 = arith.addf %144, %143 : vector<8x256xf32>
    %146 = arith.divf %144, %145 : vector<8x256xf32>
    %147 = vector.extract_strided_slice %146 {offsets = [0, 0], sizes = [8, 64], strides = [1, 1]} : vector<8x256xf32> to vector<8x64xf32>
    %148 = vector.extract_strided_slice %146 {offsets = [0, 64], sizes = [8, 64], strides = [1, 1]} : vector<8x256xf32> to vector<8x64xf32>
    %149 = vector.extract_strided_slice %146 {offsets = [0, 128], sizes = [8, 64], strides = [1, 1]} : vector<8x256xf32> to vector<8x64xf32>
    %cst_48 = arith.constant 2.000000e+00 : f32
    %150 = vector.broadcast %cst_48 : f32 to vector<8x64xf32>
    %151 = arith.mulf %150, %149 : vector<8x64xf32>
    %cst_49 = arith.constant 1.000000e+00 : f32
    %152 = vector.broadcast %cst_49 : f32 to vector<8x64xf32>
    %153 = arith.subf %151, %152 : vector<8x64xf32>
    %154 = vector.extract_strided_slice %146 {offsets = [0, 192], sizes = [8, 64], strides = [1, 1]} : vector<8x256xf32> to vector<8x64xf32>
    %155 = arith.mulf %148, %131 : vector<8x64xf32>
    %156 = arith.mulf %147, %153 : vector<8x64xf32>
    %157 = arith.addf %155, %156 : vector<8x64xf32>
    %158 = math.tanh %157 : vector<8x64xf32>
    %159 = arith.mulf %154, %158 : vector<8x64xf32>
    %c5_i32 = arith.constant 5 : i32
    %160 = arith.truncf %159 : vector<8x64xf32> to vector<8x64xbf16>
    %cst_50 = arith.constant dense<0.000000e+00> : vector<8x256xf32>
    %161 = tpu.matmul %160, %29, %cst_50 {dimension_numbers = #tpu.dot_dimension_numbers<[1], [0], [0], [1], [0, 0, 1, 1], [], []>} : vector<8x64xbf16>, vector<64x256xbf16>, vector<8x256xf32> -> vector<8x256xf32>
    %c1_i32_51 = arith.constant 1 : i32
    %162 = arith.addi %c5_i32, %c1_i32_51 : i32
    %c8_i32_52 = arith.constant 8 : i32
    %163 = arith.muli %162, %c8_i32_52 : i32
    %164 = tpu.assume_multiple %163, 8 : i32
    %165 = arith.index_cast %164 : i32 to index
    %c0_53 = arith.constant 0 : index
    %166 = vector.load %arg8[%165, %c0_53] : memref<72x256xf32, #tpu.memory_space<vmem>>, vector<8x256xf32>
    %167 = arith.addf %161, %166 : vector<8x256xf32>
    %168 = arith.negf %167 : vector<8x256xf32>
    %169 = math.exp %168 : vector<8x256xf32>
    %cst_54 = arith.constant 1.000000e+00 : f32
    %170 = vector.broadcast %cst_54 : f32 to vector<8x256xf32>
    %171 = arith.addf %170, %169 : vector<8x256xf32>
    %172 = arith.divf %170, %171 : vector<8x256xf32>
    %173 = vector.extract_strided_slice %172 {offsets = [0, 0], sizes = [8, 64], strides = [1, 1]} : vector<8x256xf32> to vector<8x64xf32>
    %174 = vector.extract_strided_slice %172 {offsets = [0, 64], sizes = [8, 64], strides = [1, 1]} : vector<8x256xf32> to vector<8x64xf32>
    %175 = vector.extract_strided_slice %172 {offsets = [0, 128], sizes = [8, 64], strides = [1, 1]} : vector<8x256xf32> to vector<8x64xf32>
    %cst_55 = arith.constant 2.000000e+00 : f32
    %176 = vector.broadcast %cst_55 : f32 to vector<8x64xf32>
    %177 = arith.mulf %176, %175 : vector<8x64xf32>
    %cst_56 = arith.constant 1.000000e+00 : f32
    %178 = vector.broadcast %cst_56 : f32 to vector<8x64xf32>
    %179 = arith.subf %177, %178 : vector<8x64xf32>
    %180 = vector.extract_strided_slice %172 {offsets = [0, 192], sizes = [8, 64], strides = [1, 1]} : vector<8x256xf32> to vector<8x64xf32>
    %181 = arith.mulf %174, %157 : vector<8x64xf32>
    %182 = arith.mulf %173, %179 : vector<8x64xf32>
    %183 = arith.addf %181, %182 : vector<8x64xf32>
    %184 = math.tanh %183 : vector<8x64xf32>
    %185 = arith.mulf %180, %184 : vector<8x64xf32>
    %c6_i32 = arith.constant 6 : i32
    %186 = arith.truncf %185 : vector<8x64xf32> to vector<8x64xbf16>
    %cst_57 = arith.constant dense<0.000000e+00> : vector<8x256xf32>
    %187 = tpu.matmul %186, %29, %cst_57 {dimension_numbers = #tpu.dot_dimension_numbers<[1], [0], [0], [1], [0, 0, 1, 1], [], []>} : vector<8x64xbf16>, vector<64x256xbf16>, vector<8x256xf32> -> vector<8x256xf32>
    %c1_i32_58 = arith.constant 1 : i32
    %188 = arith.addi %c6_i32, %c1_i32_58 : i32
    %c8_i32_59 = arith.constant 8 : i32
    %189 = arith.muli %188, %c8_i32_59 : i32
    %190 = tpu.assume_multiple %189, 8 : i32
    %191 = arith.index_cast %190 : i32 to index
    %c0_60 = arith.constant 0 : index
    %192 = vector.load %arg8[%191, %c0_60] : memref<72x256xf32, #tpu.memory_space<vmem>>, vector<8x256xf32>
    %193 = arith.addf %187, %192 : vector<8x256xf32>
    %194 = arith.negf %193 : vector<8x256xf32>
    %195 = math.exp %194 : vector<8x256xf32>
    %cst_61 = arith.constant 1.000000e+00 : f32
    %196 = vector.broadcast %cst_61 : f32 to vector<8x256xf32>
    %197 = arith.addf %196, %195 : vector<8x256xf32>
    %198 = arith.divf %196, %197 : vector<8x256xf32>
    %199 = vector.extract_strided_slice %198 {offsets = [0, 0], sizes = [8, 64], strides = [1, 1]} : vector<8x256xf32> to vector<8x64xf32>
    %200 = vector.extract_strided_slice %198 {offsets = [0, 64], sizes = [8, 64], strides = [1, 1]} : vector<8x256xf32> to vector<8x64xf32>
    %201 = vector.extract_strided_slice %198 {offsets = [0, 128], sizes = [8, 64], strides = [1, 1]} : vector<8x256xf32> to vector<8x64xf32>
    %cst_62 = arith.constant 2.000000e+00 : f32
    %202 = vector.broadcast %cst_62 : f32 to vector<8x64xf32>
    %203 = arith.mulf %202, %201 : vector<8x64xf32>
    %cst_63 = arith.constant 1.000000e+00 : f32
    %204 = vector.broadcast %cst_63 : f32 to vector<8x64xf32>
    %205 = arith.subf %203, %204 : vector<8x64xf32>
    %206 = vector.extract_strided_slice %198 {offsets = [0, 192], sizes = [8, 64], strides = [1, 1]} : vector<8x256xf32> to vector<8x64xf32>
    %207 = arith.mulf %200, %183 : vector<8x64xf32>
    %208 = arith.mulf %199, %205 : vector<8x64xf32>
    %209 = arith.addf %207, %208 : vector<8x64xf32>
    %210 = math.tanh %209 : vector<8x64xf32>
    %211 = arith.mulf %206, %210 : vector<8x64xf32>
    %c7_i32 = arith.constant 7 : i32
    %212 = arith.truncf %211 : vector<8x64xf32> to vector<8x64xbf16>
    %cst_64 = arith.constant dense<0.000000e+00> : vector<8x256xf32>
    %213 = tpu.matmul %212, %29, %cst_64 {dimension_numbers = #tpu.dot_dimension_numbers<[1], [0], [0], [1], [0, 0, 1, 1], [], []>} : vector<8x64xbf16>, vector<64x256xbf16>, vector<8x256xf32> -> vector<8x256xf32>
    %c1_i32_65 = arith.constant 1 : i32
    %214 = arith.addi %c7_i32, %c1_i32_65 : i32
    %c8_i32_66 = arith.constant 8 : i32
    %215 = arith.muli %214, %c8_i32_66 : i32
    %216 = tpu.assume_multiple %215, 8 : i32
    %217 = arith.index_cast %216 : i32 to index
    %c0_67 = arith.constant 0 : index
    %218 = vector.load %arg8[%217, %c0_67] : memref<72x256xf32, #tpu.memory_space<vmem>>, vector<8x256xf32>
    %219 = arith.addf %213, %218 : vector<8x256xf32>
    %220 = arith.negf %219 : vector<8x256xf32>
    %221 = math.exp %220 : vector<8x256xf32>
    %cst_68 = arith.constant 1.000000e+00 : f32
    %222 = vector.broadcast %cst_68 : f32 to vector<8x256xf32>
    %223 = arith.addf %222, %221 : vector<8x256xf32>
    %224 = arith.divf %222, %223 : vector<8x256xf32>
    %225 = vector.extract_strided_slice %224 {offsets = [0, 0], sizes = [8, 64], strides = [1, 1]} : vector<8x256xf32> to vector<8x64xf32>
    %226 = vector.extract_strided_slice %224 {offsets = [0, 64], sizes = [8, 64], strides = [1, 1]} : vector<8x256xf32> to vector<8x64xf32>
    %227 = vector.extract_strided_slice %224 {offsets = [0, 128], sizes = [8, 64], strides = [1, 1]} : vector<8x256xf32> to vector<8x64xf32>
    %cst_69 = arith.constant 2.000000e+00 : f32
    %228 = vector.broadcast %cst_69 : f32 to vector<8x64xf32>
    %229 = arith.mulf %228, %227 : vector<8x64xf32>
    %cst_70 = arith.constant 1.000000e+00 : f32
    %230 = vector.broadcast %cst_70 : f32 to vector<8x64xf32>
    %231 = arith.subf %229, %230 : vector<8x64xf32>
    %232 = vector.extract_strided_slice %224 {offsets = [0, 192], sizes = [8, 64], strides = [1, 1]} : vector<8x256xf32> to vector<8x64xf32>
    %233 = arith.mulf %226, %209 : vector<8x64xf32>
    %234 = arith.mulf %225, %231 : vector<8x64xf32>
    %235 = arith.addf %233, %234 : vector<8x64xf32>
    %236 = math.tanh %235 : vector<8x64xf32>
    %237 = arith.mulf %232, %236 : vector<8x64xf32>
    %c8_i32_71 = arith.constant 8 : i32
    %238 = vector.extract_strided_slice %237 {offsets = [0, 32], sizes = [8, 32], strides = [1, 1]} : vector<8x64xf32> to vector<8x32xf32>
    %239 = arith.truncf %238 : vector<8x32xf32> to vector<8x32xbf16>
    %c0_72 = arith.constant 0 : index
    %c0_73 = arith.constant 0 : index
    %240 = vector.load %arg5[%c0_72, %c0_73] : memref<32x128xbf16, #tpu.memory_space<vmem>>, vector<32x128xbf16>
    %cst_74 = arith.constant dense<0.000000e+00> : vector<8x128xf32>
    %241 = tpu.matmul %239, %240, %cst_74 {dimension_numbers = #tpu.dot_dimension_numbers<[1], [0], [0], [1], [0, 0, 1, 1], [], []>} : vector<8x32xbf16>, vector<32x128xbf16>, vector<8x128xf32> -> vector<8x128xf32>
    %c0_75 = arith.constant 0 : index
    %c0_76 = arith.constant 0 : index
    %242 = vector.load %arg6[%c0_75, %c0_76] : memref<1x128xf32, #tpu.memory_space<vmem>>, vector<1x128xf32>
    %243 = vector.broadcast %242 : vector<1x128xf32> to vector<8x128xf32>
    %244 = arith.addf %241, %243 : vector<8x128xf32>
    %c0_77 = arith.constant 0 : index
    %c0_78 = arith.constant 0 : index
    %245 = vector.load %arg7[%c0_77, %c0_78] : memref<8x128xf32, #tpu.memory_space<vmem>>, vector<8x128xf32>
    tpu.vector_store %arg7[%c0_77, %c0_78], %244 {strides = array<i32>} : memref<8x128xf32, #tpu.memory_space<vmem>>, vector<8x128xf32>,
    return
  }
  func.func @transform_0(%arg0: i32) -> (i32, i32, i32) {
    %c0_i32 = arith.constant 0 : i32
    %c0_i32_0 = arith.constant 0 : i32
    %c0_i32_1 = arith.constant 0 : i32
    return %arg0, %c0_i32, %c0_i32_0 : i32, i32, i32
  }
  func.func @transform_1(%arg0: i32) -> (i32, i32) {
    %c0_i32 = arith.constant 0 : i32
    %c0_i32_0 = arith.constant 0 : i32
    %c0_i32_1 = arith.constant 0 : i32
    return %c0_i32, %c0_i32_0 : i32, i32
  }
  func.func @transform_2(%arg0: i32) -> (i32, i32) {
    %c0_i32 = arith.constant 0 : i32
    %c0_i32_0 = arith.constant 0 : i32
    %c0_i32_1 = arith.constant 0 : i32
    return %c0_i32, %c0_i32_0 : i32, i32
  }
  func.func @transform_3(%arg0: i32) -> (i32, i32) {
    %c0_i32 = arith.constant 0 : i32
    %c0_i32_0 = arith.constant 0 : i32
    %c0_i32_1 = arith.constant 0 : i32
    return %c0_i32, %c0_i32_0 : i32, i32
  }
  func.func @transform_4(%arg0: i32) -> (i32, i32) {
    %c0_i32 = arith.constant 0 : i32
    %c0_i32_0 = arith.constant 0 : i32
    %c0_i32_1 = arith.constant 0 : i32
    return %c0_i32, %c0_i32_0 : i32, i32
  }
  func.func @transform_5(%arg0: i32) -> (i32, i32) {
    %c0_i32 = arith.constant 0 : i32
    %c0_i32_0 = arith.constant 0 : i32
    %c0_i32_1 = arith.constant 0 : i32
    return %c0_i32, %c0_i32_0 : i32, i32
  }
  func.func @transform_6(%arg0: i32) -> (i32, i32) {
    %c0_i32 = arith.constant 0 : i32
    %c0_i32_0 = arith.constant 0 : i32
    return %arg0, %c0_i32 : i32, i32
  }
}

</mosaic_0001>

<llo_original>
// kernel: tpu_custom_call.1
$region0: #{tpu_custom_call.1}
  #allocation0 [shape = 'u32[]', space=smem, size = 0x4, offset = 0x4, fixed_abs, tag = 'smem constant byte address 0x4 - core index']
  #allocation1 [shape = 'u32[144,128]{1,0:T(1,128)}', space=vmem, size = 0x12000, scoped, tag = 'internal scratch']
  #allocation2 [shape = 'f32[72,256]{1,0:T(8,128)}', space=vmem, size = 0x12000, scoped, tag = 'scratch operand']
  %s0 = inlined_call_operand.vmem [shape: bf16[1,72,4], index: 0, kind: input, shape index: {}]
  %s1 = inlined_call_operand.vmem [shape: bf16[4,256], index: 1, kind: input, shape index: {}]
  %s2 = inlined_call_operand.vmem [shape: f32[1,256], index: 2, kind: input, shape index: {}]
  %s3 = inlined_call_operand.hbm [shape: bf16[64,256], index: 3, kind: input, shape index: {}]
  %s4 = inlined_call_operand.vmem [shape: bf16[32,128], index: 4, kind: input, shape index: {}]
  %s5 = inlined_call_operand.vmem [shape: f32[1,128], index: 5, kind: input, shape index: {}]
  %s6 = inlined_call_operand.hbm [shape: f32[8,128], index: 6, kind: output, shape index: {}]
  %s7 = sld [smem:[#allocation0]]
  $region38: #{tpu_custom_call.1} parent=0
    _
  %s9 = ssub.s32 1, %s7
  %s10 = scalar_select 0, %s9, %s7
  $region1: #{tpu_custom_call.1} parent=0
    #allocation3 [shape = 'u8[32768]{0}', space=vmem, size = 0x8000, scoped, tag = 'input window, operand 3, single buffered']
    #allocation4 [shape = 's32[1]{0}', space=sflag, size = 0x4, scoped, tag = 'scoped memory for tpu_custom_call.1']
    #allocation5 [shape = 's32[1]{0}', space=sflag, size = 0x4, scoped, tag = 'scoped memory for tpu_custom_call.1']
    #allocation6 [shape = 'u8[4096]{0}', space=vmem, size = 0x1000, scoped, tag = 'output window, operand 0, single buffered']
    %11 = vsyncpa [#allocation4], 0
    %12 = vsyncpa [#allocation5], 0
    // Predicated region
    $region2: #{tpu_custom_call.1} parent=1 // pred_check
      _
    $region3: #{tpu_custom_call.1} parent=1 // pred_check_branch
      %14 = sbr.rel (0) target = $region5
    $region4: #{tpu_custom_call.1} parent=1 // pred_region
      _
    $region5: #{tpu_custom_call.1} parent=1 // pred_fallthru
      _
    // Predicated region
    $region6: #{tpu_custom_call.1} parent=1 // pred_check
      _
    $region7: #{tpu_custom_call.1} parent=1 // pred_check_branch
      %16 = sbr.rel (0) target = $region9
    $region8: #{tpu_custom_call.1} parent=1 // pred_region
      _
    $region9: #{tpu_custom_call.1} parent=1 // pred_fallthru
      _
    // Predicated region
    $region10: #{tpu_custom_call.1} parent=1 // pred_check
      _
    $region11: #{tpu_custom_call.1} parent=1 // pred_check_branch
      %18 = sbr.rel (0) target = $region13
    $region12: #{tpu_custom_call.1} parent=1 // pred_region
      _
    $region13: #{tpu_custom_call.1} parent=1 // pred_fallthru
      _
    // Predicated region
    $region14: #{tpu_custom_call.1} parent=1 // pred_check
      _
    $region15: #{tpu_custom_call.1} parent=1 // pred_check_branch
      %20 = sbr.rel (0) target = $region17
    $region16: #{tpu_custom_call.1} parent=1 // pred_region
      %s22 = ssub.s32 1024, 1024
      %23 = vsyncadd [#allocation4], %s22
      %s24 = sshll.u32 [#allocation3], 4
      %s25 = int_to_ptr.vmem [resolvable:$true] %s24
      %30 = dma.hbm_to_vmem [thread:$0]  %s3, 1024, %s25, [#allocation4], 128, 128, 8
    $region17: #{tpu_custom_call.1} parent=1 // pred_fallthru
      _
    // Predicated region
    $region18: #{tpu_custom_call.1} parent=1 // pred_check
      _
    $region19: #{tpu_custom_call.1} parent=1 // pred_check_branch
      %32 = sbr.rel (0) target = $region21
    $region20: #{tpu_custom_call.1} parent=1 // pred_region
      _
    $region21: #{tpu_custom_call.1} parent=1 // pred_fallthru
      _
    // Predicated region
    $region22: #{tpu_custom_call.1} parent=1 // pred_check
      _
    $region23: #{tpu_custom_call.1} parent=1 // pred_check_branch
      %34 = sbr.rel (0) target = $region25
    $region24: #{tpu_custom_call.1} parent=1 // pred_region
      _
    $region25: #{tpu_custom_call.1} parent=1 // pred_fallthru
      _
    // Predicated region
    $region26: #{tpu_custom_call.1} parent=1 // pred_check
      _
    $region27: #{tpu_custom_call.1} parent=1 // pred_check_branch
      %36 = sbr.rel (0) target = $region29
    $region28: #{tpu_custom_call.1} parent=1 // pred_region
      %37 = dma.done [#allocation4], 1024
    $region29: #{tpu_custom_call.1} parent=1 // pred_fallthru
      _
    %v39 = vld [vmem:[%s0] sm:$0xf]
    %v40 = vld [vmem:[%s0 + $0x4] sm:$0xf]
    %v41 = vld [vmem:[%s0 + $0x8] sm:$0xf]
    %v42 = vld [vmem:[%s0 + $0xc] sm:$0xf]
    %v43 = vld [vmem:[%s0 + $0x10] sm:$0xf]
    %v44 = vld [vmem:[%s0 + $0x14] sm:$0xf]
    %v45 = vld [vmem:[%s0 + $0x18] sm:$0xf]
    %v46 = vld [vmem:[%s0 + $0x1c] sm:$0xf]
    %v47 = vld [vmem:[%s0 + $0x20] sm:$0xf]
    %v48 = vld [vmem:[%s1] sm:$0xf]
    %v49 = vld [vmem:[%s2] sm:$0x3]
    %v51 = vlaneseq
    %v52 = vshrl.u32 %v51, 7
    %v53 = vsub.s32 0, %v52
    %v54 = vrot.slane %v49, %v53
    %v55 = vlaneseq
    %v56 = vshrl.u32 %v55, 7
    %v57 = vsub.s32 1, %v56
    %v58 = vrot.slane %v49, %v57
    %v70 = vunpack.c.l.b16 %v39
    %v71 = vunpack.c.l.b16 %v40
    %v72 = vunpack.c.l.b16 %v41
    %v73 = vunpack.c.l.b16 %v42
    %v74 = vunpack.c.l.b16 %v43
    %v75 = vunpack.c.l.b16 %v44
    %v76 = vunpack.c.l.b16 %v45
    %v77 = vunpack.c.l.b16 %v46
    %v78 = vunpack.c.l.b16 %v47
    %v79 = vpack.c.b16 %v71, %v70
    %v80 = vpack.c.b16 %v73, %v72
    %v81 = vpack.c.b16 %v75, %v74
    %v82 = vpack.c.b16 %v77, %v76
    %v83 = vpack.c.b16 %v78, %v78
    %v86 = vunpack.c.l.s4 1983009808
    %v87 = vunpack.c.0.s8 %v86
    %v88 = vlaneseq
    %v89 = vshrl.u32 %v88, 7
    %v90 = vsub.s32 %v87, %v89
    %v91 = vrot.slane %v48, %v90
    %v92 = vcombine.high %v91, %v91
    %vm93 = vcmask 31744
    %v95 = vsel %vm93, %v79, 0
    %v98 = vsel %vm93, %v80, 0
    %v101 = vsel %vm93, %v81, 0
    %v104 = vsel %vm93, %v82, 0
    %v107 = vsel %vm93, %v83, 0
    %vm109 = vcmask 1041408
    %v111 = vsel %vm109, %v91, 0
    %v114 = vsel %vm109, %v92, 0
    %116 = vmatprep.subr.bf16.mxu0 0
    %117 = vmatpush1.bf16.msra.mxu0 0
    %118 = vmatprep.subr.bf16.mxu0 0
    %119 = vmatpush1.bf16.msra.mxu0 0
    %120 = vmatprep.subr.bf16.mxu0 0
    %121 = vmatpush1.bf16.msra.mxu0 0
    %122 = vmatprep.subr.bf16.mxu0 0
    %123 = vmatpush1.bf16.msra.mxu0 0
    %124 = vmatprep.subr.bf16.mxu0 0
    %125 = vmatpush1.bf16.msra.mxu0 0
    %126 = vmatprep.subr.bf16.mxu0 0
    %127 = vmatpush1.bf16.msra.mxu0 0
    %128 = vmatprep.subr.bf16.mxu0 0
    %129 = vmatpush1.bf16.msra.mxu0 0
    %130 = vmatprep.subr.bf16.mxu0 %v114
    %131 = vmatpush1.bf16.msra.mxu0 %v111
    %132 = vmatprep.subr.bf16.mxu0 0
    %133 = vmatpush2.bf16.msra.mxu0 0
    %134 = vmatprep.subr.bf16.mxu0 0
    %135 = vmatpush2.bf16.msra.mxu0 0
    %136 = vmatprep.subr.bf16.mxu0 0
    %137 = vmatpush2.bf16.msra.mxu0 0
    %138 = vmatprep.subr.bf16.mxu0 0
    %139 = vmatpush2.bf16.msra.mxu0 0
    %140 = vmatprep.subr.bf16.mxu0 0
    %141 = vmatpush2.bf16.msra.mxu0 0
    %142 = vmatprep.subr.bf16.mxu0 0
    %143 = vmatpush2.bf16.msra.mxu0 0
    %144 = vmatprep.subr.bf16.mxu0 0
    %145 = vmatpush2.bf16.msra.mxu0 0
    %146 = vmatprep.subr.bf16.mxu0 0
    %147 = vmatpush2.bf16.msra.mxu0 0
    %148 = vmatprep.mubr.bf16.mxu0 0
    %149 = vmatmul.mubr.bf16.gmra.mxu0 %v95
    %v150 = vpop.f32.mrf.mxu0
    %v151 = vadd.f32 %v54, %v150
    %v152 = vpop.f32.mrf.mxu0
    %v153 = vadd.f32 %v58, %v152
    %v154 = vpop.f32.mrf.mxu0
    %v155 = vadd.f32 %v54, %v154
    %v156 = vpop.f32.mrf.mxu0
    %v157 = vadd.f32 %v58, %v156
    %158 = vmatprep.mubr.bf16.mxu0 0
    %159 = vmatmul.mubr.bf16.gmra.mxu0 %v98
    %v160 = vpop.f32.mrf.mxu0
    %v161 = vadd.f32 %v54, %v160
    %v162 = vpop.f32.mrf.mxu0
    %v163 = vadd.f32 %v58, %v162
    %v164 = vpop.f32.mrf.mxu0
    %v165 = vadd.f32 %v54, %v164
    %v166 = vpop.f32.mrf.mxu0
    %v167 = vadd.f32 %v58, %v166
    %168 = vmatprep.mubr.bf16.mxu0 0
    %169 = vmatmul.mubr.bf16.gmra.mxu0 %v101
    %v170 = vpop.f32.mrf.mxu0
    %v171 = vadd.f32 %v54, %v170
    %v172 = vpop.f32.mrf.mxu0
    %v173 = vadd.f32 %v58, %v172
    %v174 = vpop.f32.mrf.mxu0
    %v175 = vadd.f32 %v54, %v174
    %v176 = vpop.f32.mrf.mxu0
    %v177 = vadd.f32 %v58, %v176
    %178 = vmatprep.mubr.bf16.mxu0 0
    %179 = vmatmul.mubr.bf16.gmra.mxu0 %v104
    %v180 = vpop.f32.mrf.mxu0
    %v181 = vadd.f32 %v54, %v180
    %v182 = vpop.f32.mrf.mxu0
    %v183 = vadd.f32 %v58, %v182
    %v184 = vpop.f32.mrf.mxu0
    %v185 = vadd.f32 %v54, %v184
    %v186 = vpop.f32.mrf.mxu0
    %v187 = vadd.f32 %v58, %v186
    %188 = vmatprep.mubr.bf16.mxu0 0
    %189 = vmatmul.mubr.bf16.gmra.mxu0 %v107
    %v190 = vpop.f32.mrf.mxu0
    %v191 = vadd.f32 %v54, %v190
    %v192 = vpop.f32.mrf.mxu0
    %v193 = vadd.f32 %v58, %v192
    %v194 = vpop.f32.mrf.mxu0
    %v195 = vpop.f32.mrf.mxu0
    %196 = vdwg.mxu0
    %197 = vst [vmem:[#allocation2] sm:$0xff] %v151
    %198 = vst [vmem:[#allocation2 + $0x8] sm:$0xff] %v153
    %199 = vst [vmem:[#allocation2 + $0x10] sm:$0xff] %v155
    %200 = vst [vmem:[#allocation2 + $0x18] sm:$0xff] %v157
    %201 = vst [vmem:[#allocation2 + $0x20] sm:$0xff] %v161
    %202 = vst [vmem:[#allocation2 + $0x28] sm:$0xff] %v163
    %203 = vst [vmem:[#allocation2 + $0x30] sm:$0xff] %v165
    %204 = vst [vmem:[#allocation2 + $0x38] sm:$0xff] %v167
    %205 = vst [vmem:[#allocation2 + $0x40] sm:$0xff] %v171
    %206 = vst [vmem:[#allocation2 + $0x48] sm:$0xff] %v173
    %207 = vst [vmem:[#allocation2 + $0x50] sm:$0xff] %v175
    %208 = vst [vmem:[#allocation2 + $0x58] sm:$0xff] %v177
    %209 = vst [vmem:[#allocation2 + $0x60] sm:$0xff] %v181
    %210 = vst [vmem:[#allocation2 + $0x68] sm:$0xff] %v183
    %211 = vst [vmem:[#allocation2 + $0x70] sm:$0xff] %v185
    %212 = vst [vmem:[#allocation2 + $0x78] sm:$0xff] %v187
    %213 = vst [vmem:[#allocation2 + $0x80] sm:$0xff] %v191
    %214 = vst [vmem:[#allocation2 + $0x88] sm:$0xff] %v193
    %v215 = vlaneseq
    %v216 = vand.u32 %v215, 127
    %vm217 = vcmp.lt.s32.totalorder %v216, 32
    %v218 = vld [vmem:[#allocation2] sm:$0xff]
    %v219 = vld [vmem:[#allocation2 + $0x8] sm:$0xff]
    %v220 = vxor.u32 %v218, 2147483648
    %v221 = vxor.u32 %v219, 2147483648
    %v222 = vmul.f32 %v220, 1.442695
    %v223 = vpow.pop %v222
    %v224 = vmul.f32 %v221, 1.442695
    %v225 = vpow.pop %v224
    %v226 = vadd.f32 %v223, 1.0
    %v227 = vadd.f32 %v225, 1.0
    %v228 = vrcp.pop %v226
    %v229 = vmul.f32 1.0, %v228
    %v230 = vrcp.pop %v227
    %v231 = vmul.f32 1.0, %v230
    %v232 = vmul.f32 %v231, 2.0
    %v233 = vsub.f32 %v232, 1.0
    %v234 = vmul.f32 %v229, %v233
    %v235 = vsel %vm217, %v234, 0.0
    %v236 = vtanh.pop %v235
    %238 = vrot.lane.b32.xlu0 %v236, 64
    %v239 = vpop.permute.xlu0 %238
    %v241 = vmul.f32 %v231, %v239
    %v242 = vld [vmem:[#allocation3] sm:$0xff]
    %v243 = vld [vmem:[#allocation3 + $0x8] sm:$0xff]
    %v244 = vld [vmem:[#allocation3 + $0x10] sm:$0xff]
    %v245 = vld [vmem:[#allocation3 + $0x18] sm:$0xff]
    %v246 = vld [vmem:[#allocation3 + $0x20] sm:$0xff]
    %v247 = vld [vmem:[#allocation3 + $0x28] sm:$0xff]
    %v248 = vld [vmem:[#allocation3 + $0x30] sm:$0xff]
    %v249 = vld [vmem:[#allocation3 + $0x38] sm:$0xff]
    %v250 = vpack.c.bf16 %v241, %v241
    %s251 = smul.u32 1, 2
    %s252 = smul.addr %s251, 8
    %s253 = scalar_lea.vmem [#allocation2], %s252
    %v254 = vld [vmem:[%s253] sm:$0xff]
    %v255 = vld [vmem:[%s253 + $0x8] sm:$0xff]
    %257 = vrot.lane.b32.xlu0 %v250, 64
    %v258 = vpop.permute.xlu0 %257
    %v267 = vunpack.c.l.b16 %v242
    %v268 = vunpack.c.h.b16 %v242
    %v269 = vunpack.c.l.b16 %v243
    %v270 = vunpack.c.h.b16 %v243
    %v271 = vunpack.c.l.b16 %v244
    %v272 = vunpack.c.h.b16 %v244
    %v273 = vunpack.c.l.b16 %v245
    %v274 = vunpack.c.h.b16 %v245
    %v275 = vunpack.c.l.b16 %v246
    %v276 = vunpack.c.h.b16 %v246
    %v277 = vunpack.c.l.b16 %v247
    %v278 = vunpack.c.h.b16 %v247
    %v279 = vunpack.c.l.b16 %v248
    %v280 = vunpack.c.h.b16 %v248
    %v281 = vunpack.c.l.b16 %v249
    %v282 = vunpack.c.h.b16 %v249
    %v283 = vpack.c.b16 %v269, %v267
    %v284 = vpack.c.b16 %v270, %v268
    %v285 = vpack.c.b16 %v273, %v271
    %v286 = vpack.c.b16 %v274, %v272
    %v287 = vpack.c.b16 %v277, %v275
    %v288 = vpack.c.b16 %v278, %v276
    %v289 = vpack.c.b16 %v281, %v279
    %v290 = vpack.c.b16 %v282, %v280
    %vm299 = vcmask 523264
    %v301 = vsel %vm299, %v258, 0
    %303 = vmatprep.subr.bf16.mxu0 0
    %304 = vmatpush1.bf16.msra.mxu0 0
    %305 = vmatprep.subr.bf16.mxu0 0
    %306 = vmatpush1.bf16.msra.mxu0 0
    %307 = vmatprep.subr.bf16.mxu0 0
    %308 = vmatpush1.bf16.msra.mxu0 0
    %309 = vmatprep.subr.bf16.mxu0 0
    %310 = vmatpush1.bf16.msra.mxu0 0
    %311 = vmatprep.subr.bf16.mxu0 %v290
    %312 = vmatpush1.bf16.msra.mxu0 %v289
    %313 = vmatprep.subr.bf16.mxu0 %v288
    %314 = vmatpush1.bf16.msra.mxu0 %v287
    %315 = vmatprep.subr.bf16.mxu0 %v286
    %316 = vmatpush1.bf16.msra.mxu0 %v285
    %317 = vmatprep.subr.bf16.mxu0 %v284
    %318 = vmatpush1.bf16.msra.mxu0 %v283
    %319 = vmatprep.subr.bf16.mxu0 0
    %320 = vmatpush2.bf16.msra.mxu0 0
    %321 = vmatprep.subr.bf16.mxu0 0
    %322 = vmatpush2.bf16.msra.mxu0 0
    %323 = vmatprep.subr.bf16.mxu0 0
    %324 = vmatpush2.bf16.msra.mxu0 0
    %325 = vmatprep.subr.bf16.mxu0 0
    %326 = vmatpush2.bf16.msra.mxu0 0
    %327 = vmatprep.subr.bf16.mxu0 0
    %328 = vmatpush2.bf16.msra.mxu0 0
    %329 = vmatprep.subr.bf16.mxu0 0
    %330 = vmatpush2.bf16.msra.mxu0 0
    %331 = vmatprep.subr.bf16.mxu0 0
    %332 = vmatpush2.bf16.msra.mxu0 0
    %333 = vmatprep.subr.bf16.mxu0 0
    %334 = vmatpush2.bf16.msra.mxu0 0
    %335 = vmatprep.mubr.bf16.mxu0 0
    %336 = vmatmul.mubr.bf16.gmra.mxu0 %v301
    %v337 = vpop.f32.mrf.mxu0
    %v338 = vadd.f32 %v254, %v337
    %v339 = vpop.f32.mrf.mxu0
    %v340 = vadd.f32 %v255, %v339
    %v341 = vpop.f32.mrf.mxu0
    %v342 = vpop.f32.mrf.mxu0
    %343 = vdwg.mxu0
    %v344 = vxor.u32 %v338, 2147483648
    %v345 = vxor.u32 %v340, 2147483648
    %v346 = vmul.f32 %v344, 1.442695
    %v347 = vpow.pop %v346
    %v348 = vmul.f32 %v345, 1.442695
    %v349 = vpow.pop %v348
    %v350 = vadd.f32 %v347, 1.0
    %v351 = vadd.f32 %v349, 1.0
    %v352 = vrcp.pop %v350
    %v353 = vmul.f32 1.0, %v352
    %v354 = vrcp.pop %v351
    %v355 = vmul.f32 1.0, %v354
    %v356 = vmul.f32 %v355, 2.0
    %v357 = vsub.f32 %v356, 1.0
    %359 = vrot.lane.b32.xlu0 %v235, 64
    %v360 = vpop.permute.xlu0 %359
    %v362 = vmul.f32 %v353, %v360
    %v363 = vmul.f32 %v353, %v357
    %365 = vrot.lane.b32.xlu0 %v363, 64
    %v366 = vpop.permute.xlu0 %365
    %v368 = vadd.f32 %v362, %v366
    %v369 = vtanh.pop %v368
    %v370 = vmul.f32 %v355, %v369
    %v371 = vpack.c.bf16 %v370, %v370
    %s372 = smul.u32 2, 2
    %s373 = smul.addr %s372, 8
    %s374 = scalar_lea.vmem [#allocation2], %s373
    %v375 = vld [vmem:[%s374] sm:$0xff]
    %v376 = vld [vmem:[%s374 + $0x8] sm:$0xff]
    %378 = vrot.lane.b32.xlu0 %v371, 64
    %v379 = vpop.permute.xlu0 %378
    %v381 = vsel %vm299, %v379, 0
    %383 = vmatprep.subr.bf16.mxu0 0
    %384 = vmatpush1.bf16.msra.mxu0 0
    %385 = vmatprep.subr.bf16.mxu0 0
    %386 = vmatpush1.bf16.msra.mxu0 0
    %387 = vmatprep.subr.bf16.mxu0 0
    %388 = vmatpush1.bf16.msra.mxu0 0
    %389 = vmatprep.subr.bf16.mxu0 0
    %390 = vmatpush1.bf16.msra.mxu0 0
    %391 = vmatprep.subr.bf16.mxu0 %v290
    %392 = vmatpush1.bf16.msra.mxu0 %v289
    %393 = vmatprep.subr.bf16.mxu0 %v288
    %394 = vmatpush1.bf16.msra.mxu0 %v287
    %395 = vmatprep.subr.bf16.mxu0 %v286
    %396 = vmatpush1.bf16.msra.mxu0 %v285
    %397 = vmatprep.subr.bf16.mxu0 %v284
    %398 = vmatpush1.bf16.msra.mxu0 %v283
    %399 = vmatprep.subr.bf16.mxu0 0
    %400 = vmatpush2.bf16.msra.mxu0 0
    %401 = vmatprep.subr.bf16.mxu0 0
    %402 = vmatpush2.bf16.msra.mxu0 0
    %403 = vmatprep.subr.bf16.mxu0 0
    %404 = vmatpush2.bf16.msra.mxu0 0
    %405 = vmatprep.subr.bf16.mxu0 0
    %406 = vmatpush2.bf16.msra.mxu0 0
    %407 = vmatprep.subr.bf16.mxu0 0
    %408 = vmatpush2.bf16.msra.mxu0 0
    %409 = vmatprep.subr.bf16.mxu0 0
    %410 = vmatpush2.bf16.msra.mxu0 0
    %411 = vmatprep.subr.bf16.mxu0 0
    %412 = vmatpush2.bf16.msra.mxu0 0
    %413 = vmatprep.subr.bf16.mxu0 0
    %414 = vmatpush2.bf16.msra.mxu0 0
    %415 = vmatprep.mubr.bf16.mxu0 0
    %416 = vmatmul.mubr.bf16.gmra.mxu0 %v381
    %v417 = vpop.f32.mrf.mxu0
    %v418 = vadd.f32 %v375, %v417
    %v419 = vpop.f32.mrf.mxu0
    %v420 = vadd.f32 %v376, %v419
    %v421 = vpop.f32.mrf.mxu0
    %v422 = vpop.f32.mrf.mxu0
    %423 = vdwg.mxu0
    %v424 = vxor.u32 %v418, 2147483648
    %v425 = vxor.u32 %v420, 2147483648
    %v426 = vmul.f32 %v424, 1.442695
    %v427 = vpow.pop %v426
    %v428 = vmul.f32 %v425, 1.442695
    %v429 = vpow.pop %v428
    %v430 = vadd.f32 %v427, 1.0
    %v431 = vadd.f32 %v429, 1.0
    %v432 = vrcp.pop %v430
    %v433 = vmul.f32 1.0, %v432
    %v434 = vrcp.pop %v431
    %v435 = vmul.f32 1.0, %v434
    %v436 = vmul.f32 %v435, 2.0
    %v437 = vsub.f32 %v436, 1.0
    %v438 = vmul.f32 %v433, %v368
    %v439 = vmul.f32 %v433, %v437
    %441 = vrot.lane.b32.xlu0 %v439, 64
    %v442 = vpop.permute.xlu0 %441
    %v444 = vadd.f32 %v438, %v442
    %v445 = vtanh.pop %v444
    %v446 = vmul.f32 %v435, %v445
    %v447 = vpack.c.bf16 %v446, %v446
    %s448 = smul.u32 3, 2
    %s449 = smul.addr %s448, 8
    %s450 = scalar_lea.vmem [#allocation2], %s449
    %v451 = vld [vmem:[%s450] sm:$0xff]
    %v452 = vld [vmem:[%s450 + $0x8] sm:$0xff]
    %454 = vrot.lane.b32.xlu0 %v447, 64
    %v455 = vpop.permute.xlu0 %454
    %v457 = vsel %vm299, %v455, 0
    %459 = vmatprep.subr.bf16.mxu0 0
    %460 = vmatpush1.bf16.msra.mxu0 0
    %461 = vmatprep.subr.bf16.mxu0 0
    %462 = vmatpush1.bf16.msra.mxu0 0
    %463 = vmatprep.subr.bf16.mxu0 0
    %464 = vmatpush1.bf16.msra.mxu0 0
    %465 = vmatprep.subr.bf16.mxu0 0
    %466 = vmatpush1.bf16.msra.mxu0 0
    %467 = vmatprep.subr.bf16.mxu0 %v290
    %468 = vmatpush1.bf16.msra.mxu0 %v289
    %469 = vmatprep.subr.bf16.mxu0 %v288
    %470 = vmatpush1.bf16.msra.mxu0 %v287
    %471 = vmatprep.subr.bf16.mxu0 %v286
    %472 = vmatpush1.bf16.msra.mxu0 %v285
    %473 = vmatprep.subr.bf16.mxu0 %v284
    %474 = vmatpush1.bf16.msra.mxu0 %v283
    %475 = vmatprep.subr.bf16.mxu0 0
    %476 = vmatpush2.bf16.msra.mxu0 0
    %477 = vmatprep.subr.bf16.mxu0 0
    %478 = vmatpush2.bf16.msra.mxu0 0
    %479 = vmatprep.subr.bf16.mxu0 0
    %480 = vmatpush2.bf16.msra.mxu0 0
    %481 = vmatprep.subr.bf16.mxu0 0
    %482 = vmatpush2.bf16.msra.mxu0 0
    %483 = vmatprep.subr.bf16.mxu0 0
    %484 = vmatpush2.bf16.msra.mxu0 0
    %485 = vmatprep.subr.bf16.mxu0 0
    %486 = vmatpush2.bf16.msra.mxu0 0
    %487 = vmatprep.subr.bf16.mxu0 0
    %488 = vmatpush2.bf16.msra.mxu0 0
    %489 = vmatprep.subr.bf16.mxu0 0
    %490 = vmatpush2.bf16.msra.mxu0 0
    %491 = vmatprep.mubr.bf16.mxu0 0
    %492 = vmatmul.mubr.bf16.gmra.mxu0 %v457
    %v493 = vpop.f32.mrf.mxu0
    %v494 = vadd.f32 %v451, %v493
    %v495 = vpop.f32.mrf.mxu0
    %v496 = vadd.f32 %v452, %v495
    %v497 = vpop.f32.mrf.mxu0
    %v498 = vpop.f32.mrf.mxu0
    %499 = vdwg.mxu0
    %v500 = vxor.u32 %v494, 2147483648
    %v501 = vxor.u32 %v496, 2147483648
    %v502 = vmul.f32 %v500, 1.442695
    %v503 = vpow.pop %v502
    %v504 = vmul.f32 %v501, 1.442695
    %v505 = vpow.pop %v504
    %v506 = vadd.f32 %v503, 1.0
    %v507 = vadd.f32 %v505, 1.0
    %v508 = vrcp.pop %v506
    %v509 = vmul.f32 1.0, %v508
    %v510 = vrcp.pop %v507
    %v511 = vmul.f32 1.0, %v510
    %v512 = vmul.f32 %v511, 2.0
    %v513 = vsub.f32 %v512, 1.0
    %v514 = vmul.f32 %v509, %v444
    %v515 = vmul.f32 %v509, %v513
    %517 = vrot.lane.b32.xlu0 %v515, 64
    %v518 = vpop.permute.xlu0 %517
    %v520 = vadd.f32 %v514, %v518
    %v521 = vtanh.pop %v520
    %v522 = vmul.f32 %v511, %v521
    %v523 = vpack.c.bf16 %v522, %v522
    %s524 = smul.u32 4, 2
    %s525 = smul.addr %s524, 8
    %s526 = scalar_lea.vmem [#allocation2], %s525
    %v527 = vld [vmem:[%s526] sm:$0xff]
    %v528 = vld [vmem:[%s526 + $0x8] sm:$0xff]
    %530 = vrot.lane.b32.xlu0 %v523, 64
    %v531 = vpop.permute.xlu0 %530
    %v533 = vsel %vm299, %v531, 0
    %535 = vmatprep.subr.bf16.mxu0 0
    %536 = vmatpush1.bf16.msra.mxu0 0
    %537 = vmatprep.subr.bf16.mxu0 0
    %538 = vmatpush1.bf16.msra.mxu0 0
    %539 = vmatprep.subr.bf16.mxu0 0
    %540 = vmatpush1.bf16.msra.mxu0 0
    %541 = vmatprep.subr.bf16.mxu0 0
    %542 = vmatpush1.bf16.msra.mxu0 0
    %543 = vmatprep.subr.bf16.mxu0 %v290
    %544 = vmatpush1.bf16.msra.mxu0 %v289
    %545 = vmatprep.subr.bf16.mxu0 %v288
    %546 = vmatpush1.bf16.msra.mxu0 %v287
    %547 = vmatprep.subr.bf16.mxu0 %v286
    %548 = vmatpush1.bf16.msra.mxu0 %v285
    %549 = vmatprep.subr.bf16.mxu0 %v284
    %550 = vmatpush1.bf16.msra.mxu0 %v283
    %551 = vmatprep.subr.bf16.mxu0 0
    %552 = vmatpush2.bf16.msra.mxu0 0
    %553 = vmatprep.subr.bf16.mxu0 0
    %554 = vmatpush2.bf16.msra.mxu0 0
    %555 = vmatprep.subr.bf16.mxu0 0
    %556 = vmatpush2.bf16.msra.mxu0 0
    %557 = vmatprep.subr.bf16.mxu0 0
    %558 = vmatpush2.bf16.msra.mxu0 0
    %559 = vmatprep.subr.bf16.mxu0 0
    %560 = vmatpush2.bf16.msra.mxu0 0
    %561 = vmatprep.subr.bf16.mxu0 0
    %562 = vmatpush2.bf16.msra.mxu0 0
    %563 = vmatprep.subr.bf16.mxu0 0
    %564 = vmatpush2.bf16.msra.mxu0 0
    %565 = vmatprep.subr.bf16.mxu0 0
    %566 = vmatpush2.bf16.msra.mxu0 0
    %567 = vmatprep.mubr.bf16.mxu0 0
    %568 = vmatmul.mubr.bf16.gmra.mxu0 %v533
    %v569 = vpop.f32.mrf.mxu0
    %v570 = vadd.f32 %v527, %v569
    %v571 = vpop.f32.mrf.mxu0
    %v572 = vadd.f32 %v528, %v571
    %v573 = vpop.f32.mrf.mxu0
    %v574 = vpop.f32.mrf.mxu0
    %575 = vdwg.mxu0
    %v576 = vxor.u32 %v570, 2147483648
    %v577 = vxor.u32 %v572, 2147483648
    %v578 = vmul.f32 %v576, 1.442695
    %v579 = vpow.pop %v578
    %v580 = vmul.f32 %v577, 1.442695
    %v581 = vpow.pop %v580
    %v582 = vadd.f32 %v579, 1.0
    %v583 = vadd.f32 %v581, 1.0
    %v584 = vrcp.pop %v582
    %v585 = vmul.f32 1.0, %v584
    %v586 = vrcp.pop %v583
    %v587 = vmul.f32 1.0, %v586
    %v588 = vmul.f32 %v587, 2.0
    %v589 = vsub.f32 %v588, 1.0
    %v590 = vmul.f32 %v585, %v520
    %v591 = vmul.f32 %v585, %v589
    %593 = vrot.lane.b32.xlu0 %v591, 64
    %v594 = vpop.permute.xlu0 %593
    %v596 = vadd.f32 %v590, %v594
    %v597 = vtanh.pop %v596
    %v598 = vmul.f32 %v587, %v597
    %v599 = vpack.c.bf16 %v598, %v598
    %s600 = smul.u32 5, 2
    %s601 = smul.addr %s600, 8
    %s602 = scalar_lea.vmem [#allocation2], %s601
    %v603 = vld [vmem:[%s602] sm:$0xff]
    %v604 = vld [vmem:[%s602 + $0x8] sm:$0xff]
    %606 = vrot.lane.b32.xlu0 %v599, 64
    %v607 = vpop.permute.xlu0 %606
    %v609 = vsel %vm299, %v607, 0
    %611 = vmatprep.subr.bf16.mxu0 0
    %612 = vmatpush1.bf16.msra.mxu0 0
    %613 = vmatprep.subr.bf16.mxu0 0
    %614 = vmatpush1.bf16.msra.mxu0 0
    %615 = vmatprep.subr.bf16.mxu0 0
    %616 = vmatpush1.bf16.msra.mxu0 0
    %617 = vmatprep.subr.bf16.mxu0 0
    %618 = vmatpush1.bf16.msra.mxu0 0
    %619 = vmatprep.subr.bf16.mxu0 %v290
    %620 = vmatpush1.bf16.msra.mxu0 %v289
    %621 = vmatprep.subr.bf16.mxu0 %v288
    %622 = vmatpush1.bf16.msra.mxu0 %v287
    %623 = vmatprep.subr.bf16.mxu0 %v286
    %624 = vmatpush1.bf16.msra.mxu0 %v285
    %625 = vmatprep.subr.bf16.mxu0 %v284
    %626 = vmatpush1.bf16.msra.mxu0 %v283
    %627 = vmatprep.subr.bf16.mxu0 0
    %628 = vmatpush2.bf16.msra.mxu0 0
    %629 = vmatprep.subr.bf16.mxu0 0
    %630 = vmatpush2.bf16.msra.mxu0 0
    %631 = vmatprep.subr.bf16.mxu0 0
    %632 = vmatpush2.bf16.msra.mxu0 0
    %633 = vmatprep.subr.bf16.mxu0 0
    %634 = vmatpush2.bf16.msra.mxu0 0
    %635 = vmatprep.subr.bf16.mxu0 0
    %636 = vmatpush2.bf16.msra.mxu0 0
    %637 = vmatprep.subr.bf16.mxu0 0
    %638 = vmatpush2.bf16.msra.mxu0 0
    %639 = vmatprep.subr.bf16.mxu0 0
    %640 = vmatpush2.bf16.msra.mxu0 0
    %641 = vmatprep.subr.bf16.mxu0 0
    %642 = vmatpush2.bf16.msra.mxu0 0
    %643 = vmatprep.mubr.bf16.mxu0 0
    %644 = vmatmul.mubr.bf16.gmra.mxu0 %v609
    %v645 = vpop.f32.mrf.mxu0
    %v646 = vadd.f32 %v603, %v645
    %v647 = vpop.f32.mrf.mxu0
    %v648 = vadd.f32 %v604, %v647
    %v649 = vpop.f32.mrf.mxu0
    %v650 = vpop.f32.mrf.mxu0
    %651 = vdwg.mxu0
    %v652 = vxor.u32 %v646, 2147483648
    %v653 = vxor.u32 %v648, 2147483648
    %v654 = vmul.f32 %v652, 1.442695
    %v655 = vpow.pop %v654
    %v656 = vmul.f32 %v653, 1.442695
    %v657 = vpow.pop %v656
    %v658 = vadd.f32 %v655, 1.0
    %v659 = vadd.f32 %v657, 1.0
    %v660 = vrcp.pop %v658
    %v661 = vmul.f32 1.0, %v660
    %v662 = vrcp.pop %v659
    %v663 = vmul.f32 1.0, %v662
    %v664 = vmul.f32 %v663, 2.0
    %v665 = vsub.f32 %v664, 1.0
    %v666 = vmul.f32 %v661, %v596
    %v667 = vmul.f32 %v661, %v665
    %669 = vrot.lane.b32.xlu0 %v667, 64
    %v670 = vpop.permute.xlu0 %669
    %v672 = vadd.f32 %v666, %v670
    %v673 = vtanh.pop %v672
    %v674 = vmul.f32 %v663, %v673
    %v675 = vpack.c.bf16 %v674, %v674
    %s676 = smul.u32 6, 2
    %s677 = smul.addr %s676, 8
    %s678 = scalar_lea.vmem [#allocation2], %s677
    %v679 = vld [vmem:[%s678] sm:$0xff]
    %v680 = vld [vmem:[%s678 + $0x8] sm:$0xff]
    %682 = vrot.lane.b32.xlu0 %v675, 64
    %v683 = vpop.permute.xlu0 %682
    %v685 = vsel %vm299, %v683, 0
    %687 = vmatprep.subr.bf16.mxu0 0
    %688 = vmatpush1.bf16.msra.mxu0 0
    %689 = vmatprep.subr.bf16.mxu0 0
    %690 = vmatpush1.bf16.msra.mxu0 0
    %691 = vmatprep.subr.bf16.mxu0 0
    %692 = vmatpush1.bf16.msra.mxu0 0
    %693 = vmatprep.subr.bf16.mxu0 0
    %694 = vmatpush1.bf16.msra.mxu0 0
    %695 = vmatprep.subr.bf16.mxu0 %v290
    %696 = vmatpush1.bf16.msra.mxu0 %v289
    %697 = vmatprep.subr.bf16.mxu0 %v288
    %698 = vmatpush1.bf16.msra.mxu0 %v287
    %699 = vmatprep.subr.bf16.mxu0 %v286
    %700 = vmatpush1.bf16.msra.mxu0 %v285
    %701 = vmatprep.subr.bf16.mxu0 %v284
    %702 = vmatpush1.bf16.msra.mxu0 %v283
    %703 = vmatprep.subr.bf16.mxu0 0
    %704 = vmatpush2.bf16.msra.mxu0 0
    %705 = vmatprep.subr.bf16.mxu0 0
    %706 = vmatpush2.bf16.msra.mxu0 0
    %707 = vmatprep.subr.bf16.mxu0 0
    %708 = vmatpush2.bf16.msra.mxu0 0
    %709 = vmatprep.subr.bf16.mxu0 0
    %710 = vmatpush2.bf16.msra.mxu0 0
    %711 = vmatprep.subr.bf16.mxu0 0
    %712 = vmatpush2.bf16.msra.mxu0 0
    %713 = vmatprep.subr.bf16.mxu0 0
    %714 = vmatpush2.bf16.msra.mxu0 0
    %715 = vmatprep.subr.bf16.mxu0 0
    %716 = vmatpush2.bf16.msra.mxu0 0
    %717 = vmatprep.subr.bf16.mxu0 0
    %718 = vmatpush2.bf16.msra.mxu0 0
    %719 = vmatprep.mubr.bf16.mxu0 0
    %720 = vmatmul.mubr.bf16.gmra.mxu0 %v685
    %v721 = vpop.f32.mrf.mxu0
    %v722 = vadd.f32 %v679, %v721
    %v723 = vpop.f32.mrf.mxu0
    %v724 = vadd.f32 %v680, %v723
    %v725 = vpop.f32.mrf.mxu0
    %v726 = vpop.f32.mrf.mxu0
    %727 = vdwg.mxu0
    %v728 = vxor.u32 %v722, 2147483648
    %v729 = vxor.u32 %v724, 2147483648
    %v730 = vmul.f32 %v728, 1.442695
    %v731 = vpow.pop %v730
    %v732 = vmul.f32 %v729, 1.442695
    %v733 = vpow.pop %v732
    %v734 = vadd.f32 %v731, 1.0
    %v735 = vadd.f32 %v733, 1.0
    %v736 = vrcp.pop %v734
    %v737 = vmul.f32 1.0, %v736
    %v738 = vrcp.pop %v735
    %v739 = vmul.f32 1.0, %v738
    %v740 = vmul.f32 %v739, 2.0
    %v741 = vsub.f32 %v740, 1.0
    %v742 = vmul.f32 %v737, %v672
    %v743 = vmul.f32 %v737, %v741
    %745 = vrot.lane.b32.xlu0 %v743, 64
    %v746 = vpop.permute.xlu0 %745
    %v748 = vadd.f32 %v742, %v746
    %v749 = vtanh.pop %v748
    %v750 = vmul.f32 %v739, %v749
    %v751 = vpack.c.bf16 %v750, %v750
    %s752 = smul.u32 7, 2
    %s753 = smul.addr %s752, 8
    %s754 = scalar_lea.vmem [#allocation2], %s753
    %v755 = vld [vmem:[%s754] sm:$0xff]
    %v756 = vld [vmem:[%s754 + $0x8] sm:$0xff]
    %758 = vrot.lane.b32.xlu0 %v751, 64
    %v759 = vpop.permute.xlu0 %758
    %v761 = vsel %vm299, %v759, 0
    %763 = vmatprep.subr.bf16.mxu0 0
    %764 = vmatpush1.bf16.msra.mxu0 0
    %765 = vmatprep.subr.bf16.mxu0 0
    %766 = vmatpush1.bf16.msra.mxu0 0
    %767 = vmatprep.subr.bf16.mxu0 0
    %768 = vmatpush1.bf16.msra.mxu0 0
    %769 = vmatprep.subr.bf16.mxu0 0
    %770 = vmatpush1.bf16.msra.mxu0 0
    %771 = vmatprep.subr.bf16.mxu0 %v290
    %772 = vmatpush1.bf16.msra.mxu0 %v289
    %773 = vmatprep.subr.bf16.mxu0 %v288
    %774 = vmatpush1.bf16.msra.mxu0 %v287
    %775 = vmatprep.subr.bf16.mxu0 %v286
    %776 = vmatpush1.bf16.msra.mxu0 %v285
    %777 = vmatprep.subr.bf16.mxu0 %v284
    %778 = vmatpush1.bf16.msra.mxu0 %v283
    %779 = vmatprep.subr.bf16.mxu0 0
    %780 = vmatpush2.bf16.msra.mxu0 0
    %781 = vmatprep.subr.bf16.mxu0 0
    %782 = vmatpush2.bf16.msra.mxu0 0
    %783 = vmatprep.subr.bf16.mxu0 0
    %784 = vmatpush2.bf16.msra.mxu0 0
    %785 = vmatprep.subr.bf16.mxu0 0
    %786 = vmatpush2.bf16.msra.mxu0 0
    %787 = vmatprep.subr.bf16.mxu0 0
    %788 = vmatpush2.bf16.msra.mxu0 0
    %789 = vmatprep.subr.bf16.mxu0 0
    %790 = vmatpush2.bf16.msra.mxu0 0
    %791 = vmatprep.subr.bf16.mxu0 0
    %792 = vmatpush2.bf16.msra.mxu0 0
    %793 = vmatprep.subr.bf16.mxu0 0
    %794 = vmatpush2.bf16.msra.mxu0 0
    %795 = vmatprep.mubr.bf16.mxu0 0
    %796 = vmatmul.mubr.bf16.gmra.mxu0 %v761
    %v797 = vpop.f32.mrf.mxu0
    %v798 = vadd.f32 %v755, %v797
    %v799 = vpop.f32.mrf.mxu0
    %v800 = vadd.f32 %v756, %v799
    %v801 = vpop.f32.mrf.mxu0
    %v802 = vpop.f32.mrf.mxu0
    %803 = vdwg.mxu0
    %v804 = vxor.u32 %v798, 2147483648
    %v805 = vxor.u32 %v800, 2147483648
    %v806 = vmul.f32 %v804, 1.442695
    %v807 = vpow.pop %v806
    %v808 = vmul.f32 %v805, 1.442695
    %v809 = vpow.pop %v808
    %v810 = vadd.f32 %v807, 1.0
    %v811 = vadd.f32 %v809, 1.0
    %v812 = vrcp.pop %v810
    %v813 = vmul.f32 1.0, %v812
    %v814 = vrcp.pop %v811
    %v815 = vmul.f32 1.0, %v814
    %v816 = vmul.f32 %v815, 2.0
    %v817 = vsub.f32 %v816, 1.0
    %v818 = vmul.f32 %v813, %v748
    %v819 = vmul.f32 %v813, %v817
    %821 = vrot.lane.b32.xlu0 %v819, 64
    %v822 = vpop.permute.xlu0 %821
    %v824 = vadd.f32 %v818, %v822
    %v825 = vtanh.pop %v824
    %v826 = vmul.f32 %v815, %v825
    %v827 = vpack.c.bf16 %v826, %v826
    %s828 = smul.u32 8, 2
    %s829 = smul.addr %s828, 8
    %s830 = scalar_lea.vmem [#allocation2], %s829
    %v831 = vld [vmem:[%s830] sm:$0xff]
    %v832 = vld [vmem:[%s830 + $0x8] sm:$0xff]
    %834 = vrot.lane.b32.xlu0 %v827, 64
    %v835 = vpop.permute.xlu0 %834
    %v837 = vsel %vm299, %v835, 0
    %839 = vmatprep.subr.bf16.mxu0 0
    %840 = vmatpush1.bf16.msra.mxu0 0
    %841 = vmatprep.subr.bf16.mxu0 0
    %842 = vmatpush1.bf16.msra.mxu0 0
    %843 = vmatprep.subr.bf16.mxu0 0
    %844 = vmatpush1.bf16.msra.mxu0 0
    %845 = vmatprep.subr.bf16.mxu0 0
    %846 = vmatpush1.bf16.msra.mxu0 0
    %847 = vmatprep.subr.bf16.mxu0 %v290
    %848 = vmatpush1.bf16.msra.mxu0 %v289
    %849 = vmatprep.subr.bf16.mxu0 %v288
    %850 = vmatpush1.bf16.msra.mxu0 %v287
    %851 = vmatprep.subr.bf16.mxu0 %v286
    %852 = vmatpush1.bf16.msra.mxu0 %v285
    %853 = vmatprep.subr.bf16.mxu0 %v284
    %854 = vmatpush1.bf16.msra.mxu0 %v283
    %855 = vmatprep.subr.bf16.mxu0 0
    %856 = vmatpush2.bf16.msra.mxu0 0
    %857 = vmatprep.subr.bf16.mxu0 0
    %858 = vmatpush2.bf16.msra.mxu0 0
    %859 = vmatprep.subr.bf16.mxu0 0
    %860 = vmatpush2.bf16.msra.mxu0 0
    %861 = vmatprep.subr.bf16.mxu0 0
    %862 = vmatpush2.bf16.msra.mxu0 0
    %863 = vmatprep.subr.bf16.mxu0 0
    %864 = vmatpush2.bf16.msra.mxu0 0
    %865 = vmatprep.subr.bf16.mxu0 0
    %866 = vmatpush2.bf16.msra.mxu0 0
    %867 = vmatprep.subr.bf16.mxu0 0
    %868 = vmatpush2.bf16.msra.mxu0 0
    %869 = vmatprep.subr.bf16.mxu0 0
    %870 = vmatpush2.bf16.msra.mxu0 0
    %871 = vmatprep.mubr.bf16.mxu0 0
    %872 = vmatmul.mubr.bf16.gmra.mxu0 %v837
    %v873 = vpop.f32.mrf.mxu0
    %v874 = vadd.f32 %v831, %v873
    %v875 = vpop.f32.mrf.mxu0
    %v876 = vadd.f32 %v832, %v875
    %v877 = vpop.f32.mrf.mxu0
    %v878 = vpop.f32.mrf.mxu0
    %879 = vdwg.mxu0
    %v880 = vxor.u32 %v874, 2147483648
    %v881 = vxor.u32 %v876, 2147483648
    %v882 = vmul.f32 %v880, 1.442695
    %v883 = vpow.pop %v882
    %v884 = vmul.f32 %v881, 1.442695
    %v885 = vpow.pop %v884
    %v886 = vadd.f32 %v883, 1.0
    %v887 = vadd.f32 %v885, 1.0
    %v888 = vrcp.pop %v886
    %v889 = vmul.f32 1.0, %v888
    %v890 = vrcp.pop %v887
    %v891 = vmul.f32 1.0, %v890
    %v892 = vmul.f32 %v891, 2.0
    %v893 = vsub.f32 %v892, 1.0
    %v894 = vmul.f32 %v889, %v824
    %v895 = vmul.f32 %v889, %v893
    %897 = vrot.lane.b32.xlu0 %v895, 64
    %v898 = vpop.permute.xlu0 %897
    %v900 = vadd.f32 %v894, %v898
    %v901 = vtanh.pop %v900
    %v902 = vmul.f32 %v891, %v901
    %v903 = vpack.c.bf16 %v902, %v902
    %v904 = vld [vmem:[%s4] sm:$0xf]
    %v905 = vld [vmem:[%s4 + $0x4] sm:$0xf]
    %v906 = vld [vmem:[%s4 + $0x8] sm:$0xf]
    %v907 = vld [vmem:[%s4 + $0xc] sm:$0xf]
    %v908 = vld [vmem:[%s5] sm:$0x1]
    %v910 = vlaneseq
    %v911 = vshrl.u32 %v910, 7
    %v912 = vsub.s32 0, %v911
    %v913 = vrot.slane %v908, %v912
    %916 = vrot.lane.b32.xlu0 %v903, 32
    %v917 = vpop.permute.xlu0 %916
    %v922 = vunpack.c.l.b16 %v904
    %v923 = vunpack.c.l.b16 %v905
    %v924 = vunpack.c.l.b16 %v906
    %v925 = vunpack.c.l.b16 %v907
    %v926 = vpack.c.b16 %v923, %v922
    %v927 = vpack.c.b16 %v925, %v924
    %vm930 = vcmask 261120
    %v932 = vsel %vm930, %v917, 0
    %934 = vmatprep.subr.bf16.mxu0 0
    %935 = vmatpush1.bf16.msra.mxu0 0
    %936 = vmatprep.subr.bf16.mxu0 0
    %937 = vmatpush1.bf16.msra.mxu0 0
    %938 = vmatprep.subr.bf16.mxu0 0
    %939 = vmatpush1.bf16.msra.mxu0 0
    %940 = vmatprep.subr.bf16.mxu0 0
    %941 = vmatpush1.bf16.msra.mxu0 0
    %942 = vmatprep.subr.bf16.mxu0 0
    %943 = vmatpush1.bf16.msra.mxu0 0
    %944 = vmatprep.subr.bf16.mxu0 0
    %945 = vmatpush1.bf16.msra.mxu0 0
    %946 = vmatprep.subr.bf16.mxu0 0
    %947 = vmatpush1.bf16.msra.mxu0 %v927
    %948 = vmatprep.subr.bf16.mxu0 0
    %949 = vmatpush1.bf16.msra.mxu0 %v926
    %950 = vmatprep.subr.bf16.mxu0 0
    %951 = vmatpush2.bf16.msra.mxu0 0
    %952 = vmatprep.subr.bf16.mxu0 0
    %953 = vmatpush2.bf16.msra.mxu0 0
    %954 = vmatprep.subr.bf16.mxu0 0
    %955 = vmatpush2.bf16.msra.mxu0 0
    %956 = vmatprep.subr.bf16.mxu0 0
    %957 = vmatpush2.bf16.msra.mxu0 0
    %958 = vmatprep.subr.bf16.mxu0 0
    %959 = vmatpush2.bf16.msra.mxu0 0
    %960 = vmatprep.subr.bf16.mxu0 0
    %961 = vmatpush2.bf16.msra.mxu0 0
    %962 = vmatprep.subr.bf16.mxu0 0
    %963 = vmatpush2.bf16.msra.mxu0 0
    %964 = vmatprep.subr.bf16.mxu0 0
    %965 = vmatpush2.bf16.msra.mxu0 0
    %966 = vmatprep.mubr.bf16.mxu0 0
    %967 = vmatmul.mubr.bf16.gmra.mxu0 %v932
    %v968 = vpop.f32.mrf.mxu0
    %v969 = vadd.f32 %v913, %v968
    %v970 = vpop.f32.mrf.mxu0
    %v971 = vpop.f32.mrf.mxu0
    %v972 = vpop.f32.mrf.mxu0
    %973 = vdwg.mxu0
    %974 = vst [vmem:[#allocation6] sm:$0xff] %v969
    // Predicated region
    $region30: #{tpu_custom_call.1} parent=1 // pred_check
      _
    $region31: #{tpu_custom_call.1} parent=1 // pred_check_branch
      %976 = sbr.rel (0) target = $region33
    $region32: #{tpu_custom_call.1} parent=1 // pred_region
      %s978 = ssub.s32 128, 128
      %979 = vsyncadd [#allocation5], %s978
      %s981 = sshll.u32 [#allocation6], 4
      %s982 = int_to_ptr.vmem [resolvable:$true] %s981
      %984 = dma.vmem_to_hbm [thread:$0]  %s982, 128, %s6, [#allocation5]
    $region33: #{tpu_custom_call.1} parent=1 // pred_fallthru
      _
    // Predicated region
    $region34: #{tpu_custom_call.1} parent=1 // pred_check
      _
    $region35: #{tpu_custom_call.1} parent=1 // pred_check_branch
      %986 = sbr.rel (0) target = $region37
    $region36: #{tpu_custom_call.1} parent=1 // pred_region
      %987 = dma.done [#allocation5], 128
    $region37: #{tpu_custom_call.1} parent=1 // pred_fallthru
      _
    %988 = vsyncpa [#allocation4], 1
    %989 = vsyncpa [#allocation5], 1

</llo_original>
